<compile_context>
chip_gen: v7x
topology: tpu7x:2x2x1
jax: 0.10.0
libtpu: 0.0.40
codegen_flags: <defaults>
</compile_context>

<pallas_src>
import functools

import jax
import jax.numpy as jnp
from jax import lax
from jax.experimental import pallas as pl
from jax.experimental.pallas import tpu as pltpu

NEG_SLOPE = 0.01          # nn.LeakyReLU default
BN_EPS = 1e-5             # nn.BatchNorm1d default
NEG_BIG = -1e30           # finite "-inf" for masked maxima (avoids 0 * -inf = NaN)


def _leaky_relu(x):
    return jnp.where(x > 0, x, NEG_SLOPE * x)


def _pick_vmem_limit():
    """Generation-aware VMEM budget: ~75% of physical, capped at 96 MiB."""
    cap = 64 * 1024 * 1024                     # conservative fallback (v7x physical)
    try:
        cap = int(getattr(pltpu.get_tpu_info(), "vmem_capacity_bytes", cap))
    except Exception:
        pass
    return max(32 * 1024 * 1024, min((cap * 3) // 4, 96 * 1024 * 1024))


# ---------------------------------------------------------------------------
# The whole JT_Channel forward in one kernel.
# ---------------------------------------------------------------------------
def jt_kernel(num_heads, l3,
              # graph tensors
              x_ref, motif_ref, eattr_ref,
              src_col_ref, dst_col_ref, dst_row_ref, batch_col_ref, batch_row_ref,
              # embedding_frag_lin / embedding_edge_lin params
              wf_ref, bf_ref, gf_ref, betaf_ref,
              we_ref, be_ref, ge_ref, betae_ref,
              # fused head params (block / block-diagonal packing done in the wrapper)
              wpx_ref, wpm_ref, bp_ref,
              wattn_ref, aeT_ref, wmsg_ref, wread_ref, wout_ref,
              bcast_ref, headsum_ref,
              # outputs
              graph_ref, attw_ref):
    f32 = jnp.float32
    bf16 = jnp.bfloat16
    H = num_heads
    HL = num_heads * l3

    n_nodes = x_ref.shape[0]
    n_edges = eattr_ref.shape[0]
    n_graphs = graph_ref.shape[0]

    def _embed(z, gamma, beta):
        # nn.Linear output -> BatchNorm1d (train-mode batch stats, biased var) -> LeakyReLU
        mean = jnp.mean(z, axis=0, keepdims=True)
        var = jnp.mean((z - mean) ** 2, axis=0, keepdims=True)
        zn = (z - mean) * lax.rsqrt(var + BN_EPS) * gamma + beta
        return _leaky_relu(zn)

    # 0) fused frag / edge embeddings (previously two separate pallas_calls)
    motif_emb = _embed(
        jnp.dot(motif_ref[...], wf_ref[...], preferred_element_type=f32) + bf_ref[...],
        gf_ref[...], betaf_ref[...])                                        # (N, L3)
    edge_emb = _embed(
        jnp.dot(eattr_ref[...], we_ref[...], preferred_element_type=f32) + be_ref[...],
        ge_ref[...], betae_ref[...])                                        # (E, L3)

    # 1) project_motif for ALL heads at once (xcat never materialized)
    h_all = (jnp.dot(x_ref[...], wpx_ref[...], preferred_element_type=f32)
             + jnp.dot(motif_emb, wpm_ref[...], preferred_element_type=f32)
             + bp_ref[...])                                                 # (N, H*L3)

    # 2) head-vectorized attention projections (block matrices, no per-head slicing)
    proj = jnp.dot(h_all, wattn_ref[...], preferred_element_type=f32)       # (N, 2H)
    s_src = proj[:, :H]                                                     # (N, H)
    s_dst = proj[:, H:]                                                     # (N, H)
    node_msg = jnp.dot(h_all, wmsg_ref[...], preferred_element_type=f32)    # (N, H*L3)
    s_e = jnp.dot(edge_emb, aeT_ref[...], preferred_element_type=f32)       # (E, H)

    # 3) incidence matrices built in-kernel from int32 indices (no one-hot HBM traffic,
    #    no pre-transposed copies shipped from the wrapper)
    node_iota_e = lax.broadcasted_iota(jnp.int32, (n_edges, n_nodes), 1)
    src_match = node_iota_e == src_col_ref[...]
    dst_match = node_iota_e == dst_col_ref[...]
    ssrc = jnp.where(src_match, 1.0, 0.0).astype(bf16)                      # (E, N)
    sdst = jnp.where(dst_match, 1.0, 0.0).astype(bf16)                      # (E, N)
    neg_mask = jnp.where(dst_match, 0.0, NEG_BIG).astype(f32)               # (E, N) additive mask
    sdstT = jnp.where(
        lax.broadcasted_iota(jnp.int32, (n_nodes, n_edges), 0) == dst_row_ref[...],
        1.0, 0.0).astype(bf16)                                              # (N, E)
    gT_match = (lax.broadcasted_iota(jnp.int32, (n_nodes, n_graphs), 1)
                == batch_col_ref[...])                                      # (N, B) bool
    gT = jnp.where(gT_match, 1.0, 0.0).astype(bf16)                         # (N, B)
    g = jnp.where(
        lax.broadcasted_iota(jnp.int32, (n_graphs, n_nodes), 0) == batch_row_ref[...],
        1.0, 0.0).astype(bf16)                                              # (B, N)

    # 4) ONE lane-dense gather of all source-side quantities (bf16 MXU, f32 accumulate)
    src_pack = jnp.concatenate([s_src, node_msg], axis=-1).astype(bf16)     # (N, H+H*L3)
    edge_src = jnp.dot(ssrc, src_pack, preferred_element_type=f32)          # (E, H+H*L3)
    u = edge_src[:, :H] + s_e                                               # (E, H)
    msg_src = edge_src[:, H:]                                               # (E, H*L3)

    # 5) destination-side logit term, gathered on the MXU
    sd_e = jnp.dot(sdst, s_dst.astype(bf16), preferred_element_type=f32)    # (E, H)

    # 6) per-destination segment max (softmax stability / PyTorch parity); the "select
    #    back to edges" is a transposed-rhs matmul on the MXU, not H VPU reduce passes.
    seg_rows = [jnp.max(u[:, h:h + 1] + neg_mask, axis=0, keepdims=True)
                for h in range(H)]
    seg_hn = jnp.concatenate(seg_rows, axis=0)                              # (H, N)
    seg_max_e = lax.dot_general(sdst, seg_hn.astype(bf16),
                                dimension_numbers=(((1,), (1,)), ((), ())),
                                preferred_element_type=f32)                 # (E, H)

    score = _leaky_relu(u + sd_e)
    seg_max_score = _leaky_relu(seg_max_e + sd_e)   # per-destination max of score
    ex = jnp.exp(score - seg_max_score)                                     # (E, H)

    # 7) ONE fused scatter-add: [ex | ex * msg_src] -> per-node denom + aggregate.
    #    The H -> H*L3 expansion uses the 0/1 broadcast matrix (MXU), not lane slices.
    bcast = bcast_ref[...]                                                  # (H, H*L3)
    ex_wide = jnp.dot(ex, bcast, preferred_element_type=f32)                # (E, H*L3)
    scatter_vals = jnp.concatenate([ex, ex_wide * msg_src], axis=-1).astype(bf16)
    node_agg = jnp.dot(sdstT, scatter_vals, preferred_element_type=f32)     # (N, H+H*L3)
    denom = node_agg[:, :H]                                                 # (N, H)
    denom_safe = jnp.where(denom > 0, denom, 1.0)   # zero in-degree -> agg stays 0
    inv_denom = 1.0 / denom_safe                                            # (N, H)
    agg = node_agg[:, H:] * jnp.dot(inv_denom, bcast, preferred_element_type=f32)
    h_new = _leaky_relu(h_all + agg)                                        # (N, H*L3)

    # 8) attentive per-graph readout (per-graph softmax), head-vectorized
    rs = jnp.dot(h_new, wread_ref[...], preferred_element_type=f32)         # (N, H)
    hout = jnp.dot(h_new, wout_ref[...], preferred_element_type=f32)        # (N, H*L3)
    gmask_neg = jnp.where(gT_match, 0.0, NEG_BIG).astype(f32)               # (N, B)
    gmax_rows = [jnp.max(rs[:, h:h + 1] + gmask_neg, axis=0, keepdims=True)
                 for h in range(H)]
    gmax_hb = jnp.concatenate(gmax_rows, axis=0)                            # (H, B)
    gmax_node = lax.dot_general(gT, gmax_hb.astype(bf16),
                                dimension_numbers=(((1,), (1,)), ((), ())),
                                preferred_element_type=f32)                 # (N, H)
    rex = jnp.exp(rs - gmax_node)                                           # (N, H)
    rex_wide = jnp.dot(rex, bcast, preferred_element_type=f32)              # (N, H*L3)
    read_vals = jnp.concatenate([rex, rex_wide * hout], axis=-1).astype(bf16)
    graph_agg = jnp.dot(g, read_vals, preferred_element_type=f32)           # (B, H+H*L3)
    gden = graph_agg[:, :H]
    inv_gden = 1.0 / jnp.where(gden > 0, gden, 1.0)
    gnum = graph_agg[:, H:] * jnp.dot(inv_gden, bcast, preferred_element_type=f32)
    gsum = jnp.dot(gnum, headsum_ref[...], preferred_element_type=f32)      # (B, L3)
    graph_ref[...] = jnp.maximum(gsum * (1.0 / H), 0.0)   # relu(mean over heads)

    # 9) attention-weight epilogue fully in-kernel (no ex/denom HBM round trip)
    inv_denom_e = jnp.dot(sdst, inv_denom.astype(bf16), preferred_element_type=f32)
    alpha = ex * inv_denom_e                                                # (E, H)
    attw_ref[...] = jnp.mean(alpha, axis=-1, keepdims=True)                 # (E, 1)


def jt_channel_call(params, x, motif_nodes, edge_attr,
                    src_col, dst_col, dst_row, batch_col, batch_row, num_graphs):
    num_heads, l3 = params["num_heads"], params["l3"]
    n_nodes, l2 = x.shape
    n_edges = edge_attr.shape[0]
    fp, ep, hp = params["frag"], params["edge"], params["heads"]
    hw = num_heads * (1 + l3)

    operands = (x, motif_nodes, edge_attr,
                src_col, dst_col, dst_row, batch_col, batch_row,
                fp["w"], fp["b"], fp["gamma"], fp["beta"],
                ep["w"], ep["b"], ep["gamma"], ep["beta"],
                hp["wpx"], hp["wpm"], hp["bp"],
                hp["w_attn"], hp["a_e_T"], hp["w_msg"], hp["w_read"], hp["w_out"],
                hp["bcast"], hp["headsum"])

    flops = int(
        2 * n_edges * n_nodes * (2 * hw + 3 * num_heads)        # src gather, scatter, dst gathers
        + 2 * num_graphs * n_nodes * (hw + num_heads)           # readout scatter + graph-max select
        + 2 * n_nodes * (l2 + l3) * num_heads * l3               # project_motif (all heads)
        + 4 * n_nodes * (num_heads * l3) ** 2                    # block-diag wmsg / wout
        + 2 * n_nodes * num_heads * l3 * 3 * num_heads           # a_src / a_dst / aread projections
        + 2 * n_edges * l3 * num_heads                           # a_e projection
        + 2 * n_nodes * motif_nodes.shape[1] * l3
        + 2 * n_edges * edge_attr.shape[1] * l3)
    transcendentals = int((n_edges + 2 * n_nodes + num_graphs) * num_heads)
    bytes_accessed = int(sum(o.size * o.dtype.itemsize for o in operands)
                         + 4 * (num_graphs * l3 + n_edges))

    kernel = functools.partial(jt_kernel, num_heads, l3)
    return pl.pallas_call(
        kernel,
        out_shape=(jax.ShapeDtypeStruct((num_graphs, l3), jnp.float32),
                   jax.ShapeDtypeStruct((n_edges, 1), jnp.float32)),
        in_specs=[pl.BlockSpec(memory_space=pltpu.MemorySpace.VMEM)] * len(operands),
        out_specs=(pl.BlockSpec(memory_space=pltpu.MemorySpace.VMEM),) * 2,
        compiler_params=pltpu.CompilerParams(vmem_limit_bytes=_pick_vmem_limit()),
        cost_estimate=pl.CostEstimate(flops=flops, transcendentals=transcendentals,
                                      bytes_accessed=bytes_accessed),
    )(*operands)


# ---------------------------------------------------------------------------
# JT_Channel forward (the wrapper only reshapes the int32 indices; all math is in-kernel)
# ---------------------------------------------------------------------------
def jt_channel_forward(params, x, motif_nodes, edge_attr, edge_index, batch_vec,
                       num_graphs):
    src = edge_index[0].astype(jnp.int32)
    dst = edge_index[1].astype(jnp.int32)
    bvec = batch_vec.astype(jnp.int32)
    super_new_graph, super_attention_weight = jt_channel_call(
        params, x, motif_nodes, edge_attr,
        src[:, None], dst[:, None], dst[None, :], bvec[:, None], bvec[None, :],
        num_graphs)
    return super_new_graph, super_attention_weight


# ---------------------------------------------------------------------------
# deterministic parameter construction (per-head init, packed for the fused kernel)
# ---------------------------------------------------------------------------
def _uniform(key, shape, fan_in):
    bound = 1.0 / jnp.sqrt(jnp.float32(fan_in))
    return jax.random.uniform(key, shape, jnp.float32, -bound, bound)


def make_params(key, net_params):
    frag_dim = net_params["frag_dim"]
    nbond = net_params["num_bond_type"]
    l2 = net_params["L2_hidden_dim"]
    l3 = net_params["L3_hidden_dim"]
    nheads = net_params["num_heads"]
    HL = nheads * l3

    keys = jax.random.split(key, 4 + 8 * nheads)
    params = {
        "num_heads": nheads, "l3": l3,
        "frag": {"w": _uniform(keys[0], (frag_dim, l3), frag_dim),
                 "b": _uniform(keys[1], (1, l3), frag_dim),
                 "gamma": jnp.ones((1, l3), jnp.float32),
                 "beta": jnp.zeros((1, l3), jnp.float32)},
        "edge": {"w": _uniform(keys[2], (nbond, l3), nbond),
                 "b": _uniform(keys[3], (1, l3), nbond),
                 "gamma": jnp.ones((1, l3), jnp.float32),
                 "beta": jnp.zeros((1, l3), jnp.float32)},
    }

    wpx, wpm, bp = [], [], []
    a_src, a_dst, a_e, aread = [], [], [], []
    wmsg, wout = [], []
    for h in range(nheads):
        k = keys[4 + 8 * h: 4 + 8 * (h + 1)]
        wp = _uniform(k[0], (l2 + l3, l3), l2 + l3)
        wpx.append(wp[:l2])
        wpm.append(wp[l2:])
        bp.append(_uniform(k[1], (1, l3), l2 + l3))
        a_src.append(_uniform(k[2], (1, l3), l3))
        a_dst.append(_uniform(k[3], (1, l3), l3))
        a_e.append(_uniform(k[4], (1, l3), l3))
        wmsg.append(_uniform(k[5], (l3, l3), l3))
        aread.append(_uniform(k[6], (1, l3), l3))
        wout.append(_uniform(k[7], (l3, l3), l3))

    # block / block-diagonal packing so the kernel never loops over 32-lane head slices
    w_attn = jnp.zeros((HL, 2 * nheads), jnp.float32)
    w_read = jnp.zeros((HL, nheads), jnp.float32)
    w_msg = jnp.zeros((HL, HL), jnp.float32)
    w_out = jnp.zeros((HL, HL), jnp.float32)
    for h in range(nheads):
        sl = slice(h * l3, (h + 1) * l3)
        w_attn = w_attn.at[sl, h].set(a_src[h][0])
        w_attn = w_attn.at[sl, nheads + h].set(a_dst[h][0])
        w_read = w_read.at[sl, h].set(aread[h][0])
        w_msg = w_msg.at[sl, sl].set(wmsg[h])
        w_out = w_out.at[sl, sl].set(wout[h])

    params["heads"] = {
        "wpx": jnp.concatenate(wpx, axis=1),            # (L2, H*L3)
        "wpm": jnp.concatenate(wpm, axis=1),            # (L3, H*L3)
        "bp": jnp.concatenate(bp, axis=1),              # (1,  H*L3)
        "w_attn": w_attn,                               # (H*L3, 2H)  [a_src | a_dst] blocks
        "a_e_T": jnp.concatenate(a_e, axis=0).T,        # (L3, H)
        "w_msg": w_msg,                                 # (H*L3, H*L3) block-diag
        "w_read": w_read,                               # (H*L3, H)   aread blocks
        "w_out": w_out,                                 # (H*L3, H*L3) block-diag
        "bcast": jnp.repeat(jnp.eye(nheads, dtype=jnp.float32), l3, axis=1),  # (H, H*L3)
        "headsum": jnp.tile(jnp.eye(l3, dtype=jnp.float32), (nheads, 1)),     # (H*L3, L3)
    }
    return params


if __name__ == "__main__":
    net_params = {
        "frag_dim": 8,
        "num_bond_type": 4,
        "L2_hidden_dim": 16,
        "L3_hidden_dim": 32,
        "hidden_dim": 32,
        "L3_layers_atom": 2,
        "L3_layers_mol": 2,
        "dropout": 0.0,
        "num_heads": 2,
    }

    N_NODES, N_EDGES, N_GRAPHS = 16, 32, 2

    root = jax.random.PRNGKey(0)
    k_par, k_x, k_motif, k_edge, k_src, k_dst = jax.random.split(root, 6)

    params = make_params(k_par, net_params)

    # synthetic batched junction-tree graph data
    x = jax.random.normal(k_x, (N_NODES, net_params["L2_hidden_dim"]), jnp.float32)
    motif_nodes = jax.random.normal(k_motif, (N_NODES, net_params["frag_dim"]), jnp.float32)
    edge_attr = jax.random.normal(k_edge, (N_EDGES, net_params["num_bond_type"]), jnp.float32)

    # two graphs of 8 motif nodes each; edges stay within their graph
    nodes_per_graph = N_NODES // N_GRAPHS
    edges_per_graph = N_EDGES // N_GRAPHS
    offs = jnp.repeat(jnp.arange(N_GRAPHS) * nodes_per_graph, edges_per_graph)
    src = jax.random.randint(k_src, (N_EDGES,), 0, nodes_per_graph) + offs
    dst = jax.random.randint(k_dst, (N_EDGES,), 0, nodes_per_graph) + offs
    edge_index = jnp.stack([src, dst], axis=0).astype(jnp.int32)
    batch_vec = jnp.repeat(jnp.arange(N_GRAPHS), nodes_per_graph).astype(jnp.int32)

    super_new_graph, super_attention_weight = jt_channel_forward(
        params, x, motif_nodes, edge_attr, edge_index, batch_vec, N_GRAPHS)

    jax.block_until_ready((super_new_graph, super_attention_weight))
    assert super_new_graph.shape == (N_GRAPHS, net_params["L3_hidden_dim"])
    assert super_attention_weight.shape == (N_EDGES, 1)
    assert bool(jnp.all(jnp.isfinite(super_new_graph)))
    assert bool(jnp.all(jnp.isfinite(super_attention_weight)))
    print("KERNEL_OK")
</pallas_src>

<mosaic_0001>
module attributes {stable_mosaic.version = 11 : i64} {
  func.func @jt_kernel(%arg0: memref<16x16xf32, #tpu.memory_space<vmem>>, %arg1: memref<16x8xf32, #tpu.memory_space<vmem>>, %arg2: memref<32x4xf32, #tpu.memory_space<vmem>>, %arg3: memref<32x1xi32, #tpu.memory_space<vmem>>, %arg4: memref<32x1xi32, #tpu.memory_space<vmem>>, %arg5: memref<1x32xi32, #tpu.memory_space<vmem>>, %arg6: memref<16x1xi32, #tpu.memory_space<vmem>>, %arg7: memref<1x16xi32, #tpu.memory_space<vmem>>, %arg8: memref<8x32xf32, #tpu.memory_space<vmem>>, %arg9: memref<1x32xf32, #tpu.memory_space<vmem>>, %arg10: memref<1x32xf32, #tpu.memory_space<vmem>>, %arg11: memref<1x32xf32, #tpu.memory_space<vmem>>, %arg12: memref<4x32xf32, #tpu.memory_space<vmem>>, %arg13: memref<1x32xf32, #tpu.memory_space<vmem>>, %arg14: memref<1x32xf32, #tpu.memory_space<vmem>>, %arg15: memref<1x32xf32, #tpu.memory_space<vmem>>, %arg16: memref<16x64xf32, #tpu.memory_space<vmem>>, %arg17: memref<32x64xf32, #tpu.memory_space<vmem>>, %arg18: memref<1x64xf32, #tpu.memory_space<vmem>>, %arg19: memref<64x4xf32, #tpu.memory_space<vmem>>, %arg20: memref<32x2xf32, #tpu.memory_space<vmem>>, %arg21: memref<64x64xf32, #tpu.memory_space<vmem>>, %arg22: memref<64x2xf32, #tpu.memory_space<vmem>>, %arg23: memref<64x64xf32, #tpu.memory_space<vmem>>, %arg24: memref<2x64xf32, #tpu.memory_space<vmem>>, %arg25: memref<64x32xf32, #tpu.memory_space<vmem>>, %arg26: memref<2x32xf32, #tpu.memory_space<vmem>>, %arg27: memref<32x1xf32, #tpu.memory_space<vmem>>) attributes {dimension_semantics = [], scalar_prefetch = 0 : i64, scratch_operands = 0 : i64, tpu.core_type = #tpu.core_type<tc>} {
    %c0 = arith.constant 0 : index
    %c0_0 = arith.constant 0 : index
    %0 = vector.load %arg1[%c0, %c0_0] : memref<16x8xf32, #tpu.memory_space<vmem>>, vector<16x8xf32>
    %c0_1 = arith.constant 0 : index
    %c0_2 = arith.constant 0 : index
    %1 = vector.load %arg8[%c0_1, %c0_2] : memref<8x32xf32, #tpu.memory_space<vmem>>, vector<8x32xf32>
    %cst = arith.constant dense<0.000000e+00> : vector<16x32xf32>
    %2 = tpu.matmul %0, %1, %cst {dimension_numbers = #tpu.dot_dimension_numbers<[1], [0], [0], [1], [0, 0, 1, 1], [], []>} : vector<16x8xf32>, vector<8x32xf32>, vector<16x32xf32> -> vector<16x32xf32>
    %c0_3 = arith.constant 0 : index
    %c0_4 = arith.constant 0 : index
    %3 = vector.load %arg9[%c0_3, %c0_4] : memref<1x32xf32, #tpu.memory_space<vmem>>, vector<1x32xf32>
    %4 = vector.broadcast %3 : vector<1x32xf32> to vector<16x32xf32>
    %5 = arith.addf %2, %4 : vector<16x32xf32>
    %c0_5 = arith.constant 0 : index
    %c0_6 = arith.constant 0 : index
    %6 = vector.load %arg10[%c0_5, %c0_6] : memref<1x32xf32, #tpu.memory_space<vmem>>, vector<1x32xf32>
    %c0_7 = arith.constant 0 : index
    %c0_8 = arith.constant 0 : index
    %7 = vector.load %arg11[%c0_7, %c0_8] : memref<1x32xf32, #tpu.memory_space<vmem>>, vector<1x32xf32>
    %cst_9 = arith.constant dense<0.000000e+00> : vector<32xf32>
    %8 = vector.multi_reduction <add>, %5, %cst_9 [0] : vector<16x32xf32> to vector<32xf32>
    %9 = vector.shape_cast %8 : vector<32xf32> to vector<1x32xf32>
    %cst_10 = arith.constant 1.600000e+01 : f32
    %10 = vector.broadcast %cst_10 : f32 to vector<1x32xf32>
    %11 = arith.divf %9, %10 : vector<1x32xf32>
    %12 = vector.broadcast %11 : vector<1x32xf32> to vector<16x32xf32>
    %13 = arith.subf %5, %12 : vector<16x32xf32>
    %14 = arith.mulf %13, %13 : vector<16x32xf32>
    %cst_11 = arith.constant dense<0.000000e+00> : vector<32xf32>
    %15 = vector.multi_reduction <add>, %14, %cst_11 [0] : vector<16x32xf32> to vector<32xf32>
    %16 = vector.shape_cast %15 : vector<32xf32> to vector<1x32xf32>
    %cst_12 = arith.constant 1.600000e+01 : f32
    %17 = vector.broadcast %cst_12 : f32 to vector<1x32xf32>
    %18 = arith.divf %16, %17 : vector<1x32xf32>
    %19 = vector.broadcast %11 : vector<1x32xf32> to vector<16x32xf32>
    %20 = arith.subf %5, %19 : vector<16x32xf32>
    %cst_13 = arith.constant 9.99999974E-6 : f32
    %21 = vector.broadcast %cst_13 : f32 to vector<1x32xf32>
    %22 = arith.addf %18, %21 : vector<1x32xf32>
    %23 = math.rsqrt %22 : vector<1x32xf32>
    %24 = vector.broadcast %23 : vector<1x32xf32> to vector<16x32xf32>
    %25 = arith.mulf %20, %24 : vector<16x32xf32>
    %26 = vector.broadcast %6 : vector<1x32xf32> to vector<16x32xf32>
    %27 = arith.mulf %25, %26 : vector<16x32xf32>
    %28 = vector.broadcast %7 : vector<1x32xf32> to vector<16x32xf32>
    %29 = arith.addf %27, %28 : vector<16x32xf32>
    %cst_14 = arith.constant 0.000000e+00 : f32
    %30 = vector.broadcast %cst_14 : f32 to vector<16x32xf32>
    %31 = arith.cmpf ogt, %29, %30 : vector<16x32xf32>
    %cst_15 = arith.constant 0.00999999977 : f32
    %32 = vector.broadcast %cst_15 : f32 to vector<16x32xf32>
    %33 = arith.mulf %32, %29 : vector<16x32xf32>
    %34 = arith.select %31, %29, %33 : vector<16x32xi1>, vector<16x32xf32>
    %c0_16 = arith.constant 0 : index
    %c0_17 = arith.constant 0 : index
    %35 = vector.load %arg2[%c0_16, %c0_17] : memref<32x4xf32, #tpu.memory_space<vmem>>, vector<32x4xf32>
    %c0_18 = arith.constant 0 : index
    %c0_19 = arith.constant 0 : index
    %36 = vector.load %arg12[%c0_18, %c0_19] : memref<4x32xf32, #tpu.memory_space<vmem>>, vector<4x32xf32>
    %cst_20 = arith.constant dense<0.000000e+00> : vector<32x32xf32>
    %37 = tpu.matmul %35, %36, %cst_20 {dimension_numbers = #tpu.dot_dimension_numbers<[1], [0], [0], [1], [0, 0, 1, 1], [], []>} : vector<32x4xf32>, vector<4x32xf32>, vector<32x32xf32> -> vector<32x32xf32>
    %c0_21 = arith.constant 0 : index
    %c0_22 = arith.constant 0 : index
    %38 = vector.load %arg13[%c0_21, %c0_22] : memref<1x32xf32, #tpu.memory_space<vmem>>, vector<1x32xf32>
    %39 = vector.broadcast %38 : vector<1x32xf32> to vector<32x32xf32>
    %40 = arith.addf %37, %39 : vector<32x32xf32>
    %c0_23 = arith.constant 0 : index
    %c0_24 = arith.constant 0 : index
    %41 = vector.load %arg14[%c0_23, %c0_24] : memref<1x32xf32, #tpu.memory_space<vmem>>, vector<1x32xf32>
    %c0_25 = arith.constant 0 : index
    %c0_26 = arith.constant 0 : index
    %42 = vector.load %arg15[%c0_25, %c0_26] : memref<1x32xf32, #tpu.memory_space<vmem>>, vector<1x32xf32>
    %cst_27 = arith.constant dense<0.000000e+00> : vector<32xf32>
    %43 = vector.multi_reduction <add>, %40, %cst_27 [0] : vector<32x32xf32> to vector<32xf32>
    %44 = vector.shape_cast %43 : vector<32xf32> to vector<1x32xf32>
    %cst_28 = arith.constant 3.200000e+01 : f32
    %45 = vector.broadcast %cst_28 : f32 to vector<1x32xf32>
    %46 = arith.divf %44, %45 : vector<1x32xf32>
    %47 = vector.broadcast %46 : vector<1x32xf32> to vector<32x32xf32>
    %48 = arith.subf %40, %47 : vector<32x32xf32>
    %49 = arith.mulf %48, %48 : vector<32x32xf32>
    %cst_29 = arith.constant dense<0.000000e+00> : vector<32xf32>
    %50 = vector.multi_reduction <add>, %49, %cst_29 [0] : vector<32x32xf32> to vector<32xf32>
    %51 = vector.shape_cast %50 : vector<32xf32> to vector<1x32xf32>
    %cst_30 = arith.constant 3.200000e+01 : f32
    %52 = vector.broadcast %cst_30 : f32 to vector<1x32xf32>
    %53 = arith.divf %51, %52 : vector<1x32xf32>
    %54 = vector.broadcast %46 : vector<1x32xf32> to vector<32x32xf32>
    %55 = arith.subf %40, %54 : vector<32x32xf32>
    %cst_31 = arith.constant 9.99999974E-6 : f32
    %56 = vector.broadcast %cst_31 : f32 to vector<1x32xf32>
    %57 = arith.addf %53, %56 : vector<1x32xf32>
    %58 = math.rsqrt %57 : vector<1x32xf32>
    %59 = vector.broadcast %58 : vector<1x32xf32> to vector<32x32xf32>
    %60 = arith.mulf %55, %59 : vector<32x32xf32>
    %61 = vector.broadcast %41 : vector<1x32xf32> to vector<32x32xf32>
    %62 = arith.mulf %60, %61 : vector<32x32xf32>
    %63 = vector.broadcast %42 : vector<1x32xf32> to vector<32x32xf32>
    %64 = arith.addf %62, %63 : vector<32x32xf32>
    %cst_32 = arith.constant 0.000000e+00 : f32
    %65 = vector.broadcast %cst_32 : f32 to vector<32x32xf32>
    %66 = arith.cmpf ogt, %64, %65 : vector<32x32xf32>
    %cst_33 = arith.constant 0.00999999977 : f32
    %67 = vector.broadcast %cst_33 : f32 to vector<32x32xf32>
    %68 = arith.mulf %67, %64 : vector<32x32xf32>
    %69 = arith.select %66, %64, %68 : vector<32x32xi1>, vector<32x32xf32>
    %c0_34 = arith.constant 0 : index
    %c0_35 = arith.constant 0 : index
    %70 = vector.load %arg0[%c0_34, %c0_35] : memref<16x16xf32, #tpu.memory_space<vmem>>, vector<16x16xf32>
    %c0_36 = arith.constant 0 : index
    %c0_37 = arith.constant 0 : index
    %71 = vector.load %arg16[%c0_36, %c0_37] : memref<16x64xf32, #tpu.memory_space<vmem>>, vector<16x64xf32>
    %cst_38 = arith.constant dense<0.000000e+00> : vector<16x64xf32>
    %72 = tpu.matmul %70, %71, %cst_38 {dimension_numbers = #tpu.dot_dimension_numbers<[1], [0], [0], [1], [0, 0, 1, 1], [], []>} : vector<16x16xf32>, vector<16x64xf32>, vector<16x64xf32> -> vector<16x64xf32>
    %c0_39 = arith.constant 0 : index
    %c0_40 = arith.constant 0 : index
    %73 = vector.load %arg17[%c0_39, %c0_40] : memref<32x64xf32, #tpu.memory_space<vmem>>, vector<32x64xf32>
    %cst_41 = arith.constant dense<0.000000e+00> : vector<16x64xf32>
    %74 = tpu.matmul %34, %73, %cst_41 {dimension_numbers = #tpu.dot_dimension_numbers<[1], [0], [0], [1], [0, 0, 1, 1], [], []>} : vector<16x32xf32>, vector<32x64xf32>, vector<16x64xf32> -> vector<16x64xf32>
    %75 = arith.addf %72, %74 : vector<16x64xf32>
    %c0_42 = arith.constant 0 : index
    %c0_43 = arith.constant 0 : index
    %76 = vector.load %arg18[%c0_42, %c0_43] : memref<1x64xf32, #tpu.memory_space<vmem>>, vector<1x64xf32>
    %77 = vector.broadcast %76 : vector<1x64xf32> to vector<16x64xf32>
    %78 = arith.addf %75, %77 : vector<16x64xf32>
    %c0_44 = arith.constant 0 : index
    %c0_45 = arith.constant 0 : index
    %79 = vector.load %arg19[%c0_44, %c0_45] : memref<64x4xf32, #tpu.memory_space<vmem>>, vector<64x4xf32>
    %cst_46 = arith.constant dense<0.000000e+00> : vector<16x4xf32>
    %80 = tpu.matmul %78, %79, %cst_46 {dimension_numbers = #tpu.dot_dimension_numbers<[1], [0], [0], [1], [0, 0, 1, 1], [], []>} : vector<16x64xf32>, vector<64x4xf32>, vector<16x4xf32> -> vector<16x4xf32>
    %81 = vector.extract_strided_slice %80 {offsets = [0, 0], sizes = [16, 2], strides = [1, 1]} : vector<16x4xf32> to vector<16x2xf32>
    %82 = vector.extract_strided_slice %80 {offsets = [0, 2], sizes = [16, 2], strides = [1, 1]} : vector<16x4xf32> to vector<16x2xf32>
    %c0_47 = arith.constant 0 : index
    %c0_48 = arith.constant 0 : index
    %83 = vector.load %arg21[%c0_47, %c0_48] : memref<64x64xf32, #tpu.memory_space<vmem>>, vector<64x64xf32>
    %cst_49 = arith.constant dense<0.000000e+00> : vector<16x64xf32>
    %84 = tpu.matmul %78, %83, %cst_49 {dimension_numbers = #tpu.dot_dimension_numbers<[1], [0], [0], [1], [0, 0, 1, 1], [], []>} : vector<16x64xf32>, vector<64x64xf32>, vector<16x64xf32> -> vector<16x64xf32>
    %c0_50 = arith.constant 0 : index
    %c0_51 = arith.constant 0 : index
    %85 = vector.load %arg20[%c0_50, %c0_51] : memref<32x2xf32, #tpu.memory_space<vmem>>, vector<32x2xf32>
    %cst_52 = arith.constant dense<0.000000e+00> : vector<32x2xf32>
    %86 = tpu.matmul %69, %85, %cst_52 {dimension_numbers = #tpu.dot_dimension_numbers<[1], [0], [0], [1], [0, 0, 1, 1], [], []>} : vector<32x32xf32>, vector<32x2xf32>, vector<32x2xf32> -> vector<32x2xf32>
    %87 = tpu.iota {dimensions = array<i32: 1>} : vector<32x16xi32>
    %c0_53 = arith.constant 0 : index
    %c0_54 = arith.constant 0 : index
    %88 = vector.load %arg3[%c0_53, %c0_54] : memref<32x1xi32, #tpu.memory_space<vmem>>, vector<32x1xi32>
    %89 = vector.broadcast %88 : vector<32x1xi32> to vector<32x16xi32>
    %90 = arith.cmpi eq, %87, %89 : vector<32x16xi32>
    %c0_55 = arith.constant 0 : index
    %c0_56 = arith.constant 0 : index
    %91 = vector.load %arg4[%c0_55, %c0_56] : memref<32x1xi32, #tpu.memory_space<vmem>>, vector<32x1xi32>
    %92 = vector.broadcast %91 : vector<32x1xi32> to vector<32x16xi32>
    %93 = arith.cmpi eq, %87, %92 : vector<32x16xi32>
    %cst_57 = arith.constant 1.000000e+00 : f32
    %cst_58 = arith.constant 0.000000e+00 : f32
    %94 = vector.broadcast %cst_57 : f32 to vector<32x16xf32>
    %95 = vector.broadcast %cst_58 : f32 to vector<32x16xf32>
    %96 = arith.select %90, %94, %95 : vector<32x16xi1>, vector<32x16xf32>
    %97 = arith.truncf %96 : vector<32x16xf32> to vector<32x16xbf16>
    %cst_59 = arith.constant 1.000000e+00 : f32
    %cst_60 = arith.constant 0.000000e+00 : f32
    %98 = vector.broadcast %cst_59 : f32 to vector<32x16xf32>
    %99 = vector.broadcast %cst_60 : f32 to vector<32x16xf32>
    %100 = arith.select %93, %98, %99 : vector<32x16xi1>, vector<32x16xf32>
    %101 = arith.truncf %100 : vector<32x16xf32> to vector<32x16xbf16>
    %cst_61 = arith.constant 0.000000e+00 : f32
    %cst_62 = arith.constant -1.000000e+30 : f32
    %102 = vector.broadcast %cst_61 : f32 to vector<32x16xf32>
    %103 = vector.broadcast %cst_62 : f32 to vector<32x16xf32>
    %104 = arith.select %93, %102, %103 : vector<32x16xi1>, vector<32x16xf32>
    %105 = tpu.iota {dimensions = array<i32: 0>} : vector<16x32xi32>
    %c0_63 = arith.constant 0 : index
    %c0_64 = arith.constant 0 : index
    %106 = vector.load %arg5[%c0_63, %c0_64] : memref<1x32xi32, #tpu.memory_space<vmem>>, vector<1x32xi32>
    %107 = vector.broadcast %106 : vector<1x32xi32> to vector<16x32xi32>
    %108 = arith.cmpi eq, %105, %107 : vector<16x32xi32>
    %cst_65 = arith.constant 1.000000e+00 : f32
    %cst_66 = arith.constant 0.000000e+00 : f32
    %109 = vector.broadcast %cst_65 : f32 to vector<16x32xf32>
    %110 = vector.broadcast %cst_66 : f32 to vector<16x32xf32>
    %111 = arith.select %108, %109, %110 : vector<16x32xi1>, vector<16x32xf32>
    %112 = arith.truncf %111 : vector<16x32xf32> to vector<16x32xbf16>
    %113 = tpu.iota {dimensions = array<i32: 1>} : vector<16x2xi32>
    %c0_67 = arith.constant 0 : index
    %c0_68 = arith.constant 0 : index
    %114 = vector.load %arg6[%c0_67, %c0_68] : memref<16x1xi32, #tpu.memory_space<vmem>>, vector<16x1xi32>
    %115 = vector.broadcast %114 : vector<16x1xi32> to vector<16x2xi32>
    %116 = arith.cmpi eq, %113, %115 : vector<16x2xi32>
    %cst_69 = arith.constant 1.000000e+00 : f32
    %cst_70 = arith.constant 0.000000e+00 : f32
    %117 = vector.broadcast %cst_69 : f32 to vector<16x2xf32>
    %118 = vector.broadcast %cst_70 : f32 to vector<16x2xf32>
    %119 = arith.select %116, %117, %118 : vector<16x2xi1>, vector<16x2xf32>
    %120 = arith.truncf %119 : vector<16x2xf32> to vector<16x2xbf16>
    %121 = tpu.iota {dimensions = array<i32: 0>} : vector<2x16xi32>
    %c0_71 = arith.constant 0 : index
    %c0_72 = arith.constant 0 : index
    %122 = vector.load %arg7[%c0_71, %c0_72] : memref<1x16xi32, #tpu.memory_space<vmem>>, vector<1x16xi32>
    %123 = vector.broadcast %122 : vector<1x16xi32> to vector<2x16xi32>
    %124 = arith.cmpi eq, %121, %123 : vector<2x16xi32>
    %cst_73 = arith.constant 1.000000e+00 : f32
    %cst_74 = arith.constant 0.000000e+00 : f32
    %125 = vector.broadcast %cst_73 : f32 to vector<2x16xf32>
    %126 = vector.broadcast %cst_74 : f32 to vector<2x16xf32>
    %127 = arith.select %124, %125, %126 : vector<2x16xi1>, vector<2x16xf32>
    %128 = arith.truncf %127 : vector<2x16xf32> to vector<2x16xbf16>
    %129 = tpu.concatenate %81, %84 in 1 : vector<16x2xf32>, vector<16x64xf32> -> vector<16x66xf32>
    %130 = arith.truncf %129 : vector<16x66xf32> to vector<16x66xbf16>
    %cst_75 = arith.constant dense<0.000000e+00> : vector<32x66xf32>
    %131 = tpu.matmul %97, %130, %cst_75 {dimension_numbers = #tpu.dot_dimension_numbers<[1], [0], [0], [1], [0, 0, 1, 1], [], []>} : vector<32x16xbf16>, vector<16x66xbf16>, vector<32x66xf32> -> vector<32x66xf32>
    %132 = vector.extract_strided_slice %131 {offsets = [0, 0], sizes = [32, 2], strides = [1, 1]} : vector<32x66xf32> to vector<32x2xf32>
    %133 = arith.addf %132, %86 : vector<32x2xf32>
    %134 = vector.extract_strided_slice %131 {offsets = [0, 2], sizes = [32, 64], strides = [1, 1]} : vector<32x66xf32> to vector<32x64xf32>
    %135 = arith.truncf %82 : vector<16x2xf32> to vector<16x2xbf16>
    %cst_76 = arith.constant dense<0.000000e+00> : vector<32x2xf32>
    %136 = tpu.matmul %101, %135, %cst_76 {dimension_numbers = #tpu.dot_dimension_numbers<[1], [0], [0], [1], [0, 0, 1, 1], [], []>} : vector<32x16xbf16>, vector<16x2xbf16>, vector<32x2xf32> -> vector<32x2xf32>
    %137 = vector.extract_strided_slice %133 {offsets = [0, 0], sizes = [32, 1], strides = [1, 1]} : vector<32x2xf32> to vector<32x1xf32>
    %138 = vector.broadcast %137 : vector<32x1xf32> to vector<32x16xf32>
    %139 = arith.addf %138, %104 : vector<32x16xf32>
    %cst_77 = arith.constant dense<0xFF800000> : vector<16xf32>
    %140 = vector.multi_reduction <maximumf>, %139, %cst_77 [0] : vector<32x16xf32> to vector<16xf32>
    %141 = vector.shape_cast %140 : vector<16xf32> to vector<1x16xf32>
    %142 = vector.extract_strided_slice %133 {offsets = [0, 1], sizes = [32, 1], strides = [1, 1]} : vector<32x2xf32> to vector<32x1xf32>
    %143 = vector.broadcast %142 : vector<32x1xf32> to vector<32x16xf32>
    %144 = arith.addf %143, %104 : vector<32x16xf32>
    %cst_78 = arith.constant dense<0xFF800000> : vector<16xf32>
    %145 = vector.multi_reduction <maximumf>, %144, %cst_78 [0] : vector<32x16xf32> to vector<16xf32>
    %146 = vector.shape_cast %145 : vector<16xf32> to vector<1x16xf32>
    %147 = tpu.concatenate %141, %146 in 0 : vector<1x16xf32>, vector<1x16xf32> -> vector<2x16xf32>
    %148 = arith.truncf %147 : vector<2x16xf32> to vector<2x16xbf16>
    %cst_79 = arith.constant dense<0.000000e+00> : vector<32x2xf32>
    %149 = tpu.matmul %101, %148, %cst_79 {dimension_numbers = #tpu.dot_dimension_numbers<[1], [1], [0], [0], [0, 0, 1, 0], [], []>} : vector<32x16xbf16>, vector<2x16xbf16>, vector<32x2xf32> -> vector<32x2xf32>
    %150 = arith.addf %133, %136 : vector<32x2xf32>
    %cst_80 = arith.constant 0.000000e+00 : f32
    %151 = vector.broadcast %cst_80 : f32 to vector<32x2xf32>
    %152 = arith.cmpf ogt, %150, %151 : vector<32x2xf32>
    %cst_81 = arith.constant 0.00999999977 : f32
    %153 = vector.broadcast %cst_81 : f32 to vector<32x2xf32>
    %154 = arith.mulf %153, %150 : vector<32x2xf32>
    %155 = arith.select %152, %150, %154 : vector<32x2xi1>, vector<32x2xf32>
    %156 = arith.addf %149, %136 : vector<32x2xf32>
    %cst_82 = arith.constant 0.000000e+00 : f32
    %157 = vector.broadcast %cst_82 : f32 to vector<32x2xf32>
    %158 = arith.cmpf ogt, %156, %157 : vector<32x2xf32>
    %cst_83 = arith.constant 0.00999999977 : f32
    %159 = vector.broadcast %cst_83 : f32 to vector<32x2xf32>
    %160 = arith.mulf %159, %156 : vector<32x2xf32>
    %161 = arith.select %158, %156, %160 : vector<32x2xi1>, vector<32x2xf32>
    %162 = arith.subf %155, %161 : vector<32x2xf32>
    %163 = math.exp %162 : vector<32x2xf32>
    %c0_84 = arith.constant 0 : index
    %c0_85 = arith.constant 0 : index
    %164 = vector.load %arg24[%c0_84, %c0_85] : memref<2x64xf32, #tpu.memory_space<vmem>>, vector<2x64xf32>
    %cst_86 = arith.constant dense<0.000000e+00> : vector<32x64xf32>
    %165 = tpu.matmul %163, %164, %cst_86 {dimension_numbers = #tpu.dot_dimension_numbers<[1], [0], [0], [1], [0, 0, 1, 1], [], []>} : vector<32x2xf32>, vector<2x64xf32>, vector<32x64xf32> -> vector<32x64xf32>
    %166 = arith.mulf %165, %134 : vector<32x64xf32>
    %167 = tpu.concatenate %163, %166 in 1 : vector<32x2xf32>, vector<32x64xf32> -> vector<32x66xf32>
    %168 = arith.truncf %167 : vector<32x66xf32> to vector<32x66xbf16>
    %cst_87 = arith.constant dense<0.000000e+00> : vector<16x66xf32>
    %169 = tpu.matmul %112, %168, %cst_87 {dimension_numbers = #tpu.dot_dimension_numbers<[1], [0], [0], [1], [0, 0, 1, 1], [], []>} : vector<16x32xbf16>, vector<32x66xbf16>, vector<16x66xf32> -> vector<16x66xf32>
    %170 = vector.extract_strided_slice %169 {offsets = [0, 0], sizes = [16, 2], strides = [1, 1]} : vector<16x66xf32> to vector<16x2xf32>
    %cst_88 = arith.constant 0.000000e+00 : f32
    %171 = vector.broadcast %cst_88 : f32 to vector<16x2xf32>
    %172 = arith.cmpf ogt, %170, %171 : vector<16x2xf32>
    %cst_89 = arith.constant 1.000000e+00 : f32
    %173 = vector.broadcast %cst_89 : f32 to vector<16x2xf32>
    %174 = arith.select %172, %170, %173 : vector<16x2xi1>, vector<16x2xf32>
    %cst_90 = arith.constant 1.000000e+00 : f32
    %175 = vector.broadcast %cst_90 : f32 to vector<16x2xf32>
    %176 = arith.divf %175, %174 : vector<16x2xf32>
    %177 = vector.extract_strided_slice %169 {offsets = [0, 2], sizes = [16, 64], strides = [1, 1]} : vector<16x66xf32> to vector<16x64xf32>
    %cst_91 = arith.constant dense<0.000000e+00> : vector<16x64xf32>
    %178 = tpu.matmul %176, %164, %cst_91 {dimension_numbers = #tpu.dot_dimension_numbers<[1], [0], [0], [1], [0, 0, 1, 1], [], []>} : vector<16x2xf32>, vector<2x64xf32>, vector<16x64xf32> -> vector<16x64xf32>
    %179 = arith.mulf %177, %178 : vector<16x64xf32>
    %180 = arith.addf %78, %179 : vector<16x64xf32>
    %cst_92 = arith.constant 0.000000e+00 : f32
    %181 = vector.broadcast %cst_92 : f32 to vector<16x64xf32>
    %182 = arith.cmpf ogt, %180, %181 : vector<16x64xf32>
    %cst_93 = arith.constant 0.00999999977 : f32
    %183 = vector.broadcast %cst_93 : f32 to vector<16x64xf32>
    %184 = arith.mulf %183, %180 : vector<16x64xf32>
    %185 = arith.select %182, %180, %184 : vector<16x64xi1>, vector<16x64xf32>
    %c0_94 = arith.constant 0 : index
    %c0_95 = arith.constant 0 : index
    %186 = vector.load %arg22[%c0_94, %c0_95] : memref<64x2xf32, #tpu.memory_space<vmem>>, vector<64x2xf32>
    %cst_96 = arith.constant dense<0.000000e+00> : vector<16x2xf32>
    %187 = tpu.matmul %185, %186, %cst_96 {dimension_numbers = #tpu.dot_dimension_numbers<[1], [0], [0], [1], [0, 0, 1, 1], [], []>} : vector<16x64xf32>, vector<64x2xf32>, vector<16x2xf32> -> vector<16x2xf32>
    %c0_97 = arith.constant 0 : index
    %c0_98 = arith.constant 0 : index
    %188 = vector.load %arg23[%c0_97, %c0_98] : memref<64x64xf32, #tpu.memory_space<vmem>>, vector<64x64xf32>
    %cst_99 = arith.constant dense<0.000000e+00> : vector<16x64xf32>
    %189 = tpu.matmul %185, %188, %cst_99 {dimension_numbers = #tpu.dot_dimension_numbers<[1], [0], [0], [1], [0, 0, 1, 1], [], []>} : vector<16x64xf32>, vector<64x64xf32>, vector<16x64xf32> -> vector<16x64xf32>
    %cst_100 = arith.constant 0.000000e+00 : f32
    %cst_101 = arith.constant -1.000000e+30 : f32
    %190 = vector.broadcast %cst_100 : f32 to vector<16x2xf32>
    %191 = vector.broadcast %cst_101 : f32 to vector<16x2xf32>
    %192 = arith.select %116, %190, %191 : vector<16x2xi1>, vector<16x2xf32>
    %193 = vector.extract_strided_slice %187 {offsets = [0, 0], sizes = [16, 1], strides = [1, 1]} : vector<16x2xf32> to vector<16x1xf32>
    %194 = vector.broadcast %193 : vector<16x1xf32> to vector<16x2xf32>
    %195 = arith.addf %194, %192 : vector<16x2xf32>
    %cst_102 = arith.constant dense<0xFF800000> : vector<2xf32>
    %196 = vector.multi_reduction <maximumf>, %195, %cst_102 [0] : vector<16x2xf32> to vector<2xf32>
    %197 = vector.shape_cast %196 : vector<2xf32> to vector<1x2xf32>
    %198 = vector.extract_strided_slice %187 {offsets = [0, 1], sizes = [16, 1], strides = [1, 1]} : vector<16x2xf32> to vector<16x1xf32>
    %199 = vector.broadcast %198 : vector<16x1xf32> to vector<16x2xf32>
    %200 = arith.addf %199, %192 : vector<16x2xf32>
    %cst_103 = arith.constant dense<0xFF800000> : vector<2xf32>
    %201 = vector.multi_reduction <maximumf>, %200, %cst_103 [0] : vector<16x2xf32> to vector<2xf32>
    %202 = vector.shape_cast %201 : vector<2xf32> to vector<1x2xf32>
    %203 = tpu.concatenate %197, %202 in 0 : vector<1x2xf32>, vector<1x2xf32> -> vector<2x2xf32>
    %204 = arith.truncf %203 : vector<2x2xf32> to vector<2x2xbf16>
    %cst_104 = arith.constant dense<0.000000e+00> : vector<16x2xf32>
    %205 = tpu.matmul %120, %204, %cst_104 {dimension_numbers = #tpu.dot_dimension_numbers<[1], [1], [0], [0], [0, 0, 1, 0], [], []>} : vector<16x2xbf16>, vector<2x2xbf16>, vector<16x2xf32> -> vector<16x2xf32>
    %206 = arith.subf %187, %205 : vector<16x2xf32>
    %207 = math.exp %206 : vector<16x2xf32>
    %cst_105 = arith.constant dense<0.000000e+00> : vector<16x64xf32>
    %208 = tpu.matmul %207, %164, %cst_105 {dimension_numbers = #tpu.dot_dimension_numbers<[1], [0], [0], [1], [0, 0, 1, 1], [], []>} : vector<16x2xf32>, vector<2x64xf32>, vector<16x64xf32> -> vector<16x64xf32>
    %209 = arith.mulf %208, %189 : vector<16x64xf32>
    %210 = tpu.concatenate %207, %209 in 1 : vector<16x2xf32>, vector<16x64xf32> -> vector<16x66xf32>
    %211 = arith.truncf %210 : vector<16x66xf32> to vector<16x66xbf16>
    %cst_106 = arith.constant dense<0.000000e+00> : vector<2x66xf32>
    %212 = tpu.matmul %128, %211, %cst_106 {dimension_numbers = #tpu.dot_dimension_numbers<[1], [0], [0], [1], [0, 0, 1, 1], [], []>} : vector<2x16xbf16>, vector<16x66xbf16>, vector<2x66xf32> -> vector<2x66xf32>
    %213 = vector.extract_strided_slice %212 {offsets = [0, 0], sizes = [2, 2], strides = [1, 1]} : vector<2x66xf32> to vector<2x2xf32>
    %cst_107 = arith.constant 0.000000e+00 : f32
    %214 = vector.broadcast %cst_107 : f32 to vector<2x2xf32>
    %215 = arith.cmpf ogt, %213, %214 : vector<2x2xf32>
    %cst_108 = arith.constant 1.000000e+00 : f32
    %216 = vector.broadcast %cst_108 : f32 to vector<2x2xf32>
    %217 = arith.select %215, %213, %216 : vector<2x2xi1>, vector<2x2xf32>
    %cst_109 = arith.constant 1.000000e+00 : f32
    %218 = vector.broadcast %cst_109 : f32 to vector<2x2xf32>
    %219 = arith.divf %218, %217 : vector<2x2xf32>
    %220 = vector.extract_strided_slice %212 {offsets = [0, 2], sizes = [2, 64], strides = [1, 1]} : vector<2x66xf32> to vector<2x64xf32>
    %cst_110 = arith.constant dense<0.000000e+00> : vector<2x64xf32>
    %221 = tpu.matmul %219, %164, %cst_110 {dimension_numbers = #tpu.dot_dimension_numbers<[1], [0], [0], [1], [0, 0, 1, 1], [], []>} : vector<2x2xf32>, vector<2x64xf32>, vector<2x64xf32> -> vector<2x64xf32>
    %222 = arith.mulf %220, %221 : vector<2x64xf32>
    %c0_111 = arith.constant 0 : index
    %c0_112 = arith.constant 0 : index
    %223 = vector.load %arg25[%c0_111, %c0_112] : memref<64x32xf32, #tpu.memory_space<vmem>>, vector<64x32xf32>
    %cst_113 = arith.constant dense<0.000000e+00> : vector<2x32xf32>
    %224 = tpu.matmul %222, %223, %cst_113 {dimension_numbers = #tpu.dot_dimension_numbers<[1], [0], [0], [1], [0, 0, 1, 1], [], []>} : vector<2x64xf32>, vector<64x32xf32>, vector<2x32xf32> -> vector<2x32xf32>
    %cst_114 = arith.constant 5.000000e-01 : f32
    %225 = vector.broadcast %cst_114 : f32 to vector<2x32xf32>
    %226 = arith.mulf %224, %225 : vector<2x32xf32>
    %cst_115 = arith.constant 0.000000e+00 : f32
    %227 = vector.broadcast %cst_115 : f32 to vector<2x32xf32>
    %228 = arith.maximumf %226, %227 : vector<2x32xf32>
    %c0_116 = arith.constant 0 : index
    %c0_117 = arith.constant 0 : index
    %229 = vector.load %arg26[%c0_116, %c0_117] : memref<2x32xf32, #tpu.memory_space<vmem>>, vector<2x32xf32>
    tpu.vector_store %arg26[%c0_116, %c0_117], %228 {strides = array<i32>} : memref<2x32xf32, #tpu.memory_space<vmem>>, vector<2x32xf32>,
    %230 = arith.truncf %176 : vector<16x2xf32> to vector<16x2xbf16>
    %cst_118 = arith.constant dense<0.000000e+00> : vector<32x2xf32>
    %231 = tpu.matmul %101, %230, %cst_118 {dimension_numbers = #tpu.dot_dimension_numbers<[1], [0], [0], [1], [0, 0, 1, 1], [], []>} : vector<32x16xbf16>, vector<16x2xbf16>, vector<32x2xf32> -> vector<32x2xf32>
    %232 = arith.mulf %163, %231 : vector<32x2xf32>
    %cst_119 = arith.constant dense<0.000000e+00> : vector<32xf32>
    %233 = vector.multi_reduction <add>, %232, %cst_119 [1] : vector<32x2xf32> to vector<32xf32>
    %234 = vector.shape_cast %233 : vector<32xf32> to vector<32x1xf32>
    %cst_120 = arith.constant 2.000000e+00 : f32
    %235 = vector.broadcast %cst_120 : f32 to vector<32x1xf32>
    %236 = arith.divf %234, %235 : vector<32x1xf32>
    %c0_121 = arith.constant 0 : index
    %c0_122 = arith.constant 0 : index
    %237 = vector.load %arg27[%c0_121, %c0_122] : memref<32x1xf32, #tpu.memory_space<vmem>>, vector<32x1xf32>
    tpu.vector_store %arg27[%c0_121, %c0_122], %236 {strides = array<i32>} : memref<32x1xf32, #tpu.memory_space<vmem>>, vector<32x1xf32>,
    return
  }
}

</mosaic_0001>

<llo_original>
// kernel: tpu_custom_call.1
$region0: #{tpu_custom_call.1}
  #allocation0 [shape = 'u32[]', space=smem, size = 0x4, offset = 0x4, fixed_abs, tag = 'smem constant byte address 0x4 - core index']
  #allocation1 [shape = 'u32[144,128]{1,0:T(1,128)}', space=vmem, size = 0x12000, scoped, tag = 'internal scratch']
  %s0 = inlined_call_operand.vmem [shape: f32[16,16], index: 0, kind: input, shape index: {}]
  %s1 = inlined_call_operand.vmem [shape: f32[16,8], index: 1, kind: input, shape index: {}]
  %s2 = inlined_call_operand.vmem [shape: f32[32,4], index: 2, kind: input, shape index: {}]
  %s3 = inlined_call_operand.vmem [shape: s32[32,1], index: 3, kind: input, shape index: {}]
  %s4 = inlined_call_operand.vmem [shape: s32[32,1], index: 4, kind: input, shape index: {}]
  %s5 = inlined_call_operand.vmem [shape: s32[1,32], index: 5, kind: input, shape index: {}]
  %s6 = inlined_call_operand.vmem [shape: s32[16,1], index: 6, kind: input, shape index: {}]
  %s7 = inlined_call_operand.vmem [shape: s32[1,16], index: 7, kind: input, shape index: {}]
  %s8 = inlined_call_operand.vmem [shape: f32[8,32], index: 8, kind: input, shape index: {}]
  %s9 = inlined_call_operand.vmem [shape: f32[1,32], index: 9, kind: input, shape index: {}]
  %s10 = inlined_call_operand.vmem [shape: f32[1,32], index: 10, kind: input, shape index: {}]
  %s11 = inlined_call_operand.vmem [shape: f32[1,32], index: 11, kind: input, shape index: {}]
  %s12 = inlined_call_operand.vmem [shape: f32[4,32], index: 12, kind: input, shape index: {}]
  %s13 = inlined_call_operand.vmem [shape: f32[1,32], index: 13, kind: input, shape index: {}]
  %s14 = inlined_call_operand.vmem [shape: f32[1,32], index: 14, kind: input, shape index: {}]
  %s15 = inlined_call_operand.vmem [shape: f32[1,32], index: 15, kind: input, shape index: {}]
  %s16 = inlined_call_operand.vmem [shape: f32[16,64], index: 16, kind: input, shape index: {}]
  %s17 = inlined_call_operand.vmem [shape: f32[32,64], index: 17, kind: input, shape index: {}]
  %s18 = inlined_call_operand.vmem [shape: f32[1,64], index: 18, kind: input, shape index: {}]
  %s19 = inlined_call_operand.vmem [shape: f32[64,4], index: 19, kind: input, shape index: {}]
  %s20 = inlined_call_operand.vmem [shape: f32[32,2], index: 20, kind: input, shape index: {}]
  %s21 = inlined_call_operand.vmem [shape: f32[64,64], index: 21, kind: input, shape index: {}]
  %s22 = inlined_call_operand.vmem [shape: f32[64,2], index: 22, kind: input, shape index: {}]
  %s23 = inlined_call_operand.vmem [shape: f32[64,64], index: 23, kind: input, shape index: {}]
  %s24 = inlined_call_operand.vmem [shape: f32[2,64], index: 24, kind: input, shape index: {}]
  %s25 = inlined_call_operand.vmem [shape: f32[64,32], index: 25, kind: input, shape index: {}]
  %s26 = inlined_call_operand.hbm [shape: f32[2,32], index: 26, kind: output, shape index: {0}]
  %s27 = inlined_call_operand.vmem [shape: f32[32,1], index: 27, kind: output, shape index: {1}]
  %28 = xla_tuple %s26, %s27
  %s29 = sld [smem:[#allocation0]]
  $region122: #{tpu_custom_call.1} parent=0
    _
  %s31 = ssub.s32 1, %s29
  %s32 = scalar_select 0, %s31, %s29
  $region1: #{tpu_custom_call.1} parent=0
    #allocation2 [shape = 'u8[1024]{0}', space=vmem, size = 0x400, scoped, tag = 'output window, operand 0, single buffered']
    #allocation3 [shape = 's32[1]{0}', space=sflag, size = 0x4, scoped, tag = 'scoped memory for tpu_custom_call.1']
    %33 = vsyncpa [#allocation3], 0
    // Predicated region
    $region2: #{tpu_custom_call.1} parent=1 // pred_check
      _
    $region3: #{tpu_custom_call.1} parent=1 // pred_check_branch
      %35 = sbr.rel (0) target = $region5
    $region4: #{tpu_custom_call.1} parent=1 // pred_region
      _
    $region5: #{tpu_custom_call.1} parent=1 // pred_fallthru
      _
    // Predicated region
    $region6: #{tpu_custom_call.1} parent=1 // pred_check
      _
    $region7: #{tpu_custom_call.1} parent=1 // pred_check_branch
      %37 = sbr.rel (0) target = $region9
    $region8: #{tpu_custom_call.1} parent=1 // pred_region
      _
    $region9: #{tpu_custom_call.1} parent=1 // pred_fallthru
      _
    // Predicated region
    $region10: #{tpu_custom_call.1} parent=1 // pred_check
      _
    $region11: #{tpu_custom_call.1} parent=1 // pred_check_branch
      %39 = sbr.rel (0) target = $region13
    $region12: #{tpu_custom_call.1} parent=1 // pred_region
      _
    $region13: #{tpu_custom_call.1} parent=1 // pred_fallthru
      _
    // Predicated region
    $region14: #{tpu_custom_call.1} parent=1 // pred_check
      _
    $region15: #{tpu_custom_call.1} parent=1 // pred_check_branch
      %41 = sbr.rel (0) target = $region17
    $region16: #{tpu_custom_call.1} parent=1 // pred_region
      _
    $region17: #{tpu_custom_call.1} parent=1 // pred_fallthru
      _
    // Predicated region
    $region18: #{tpu_custom_call.1} parent=1 // pred_check
      _
    $region19: #{tpu_custom_call.1} parent=1 // pred_check_branch
      %43 = sbr.rel (0) target = $region21
    $region20: #{tpu_custom_call.1} parent=1 // pred_region
      _
    $region21: #{tpu_custom_call.1} parent=1 // pred_fallthru
      _
    // Predicated region
    $region22: #{tpu_custom_call.1} parent=1 // pred_check
      _
    $region23: #{tpu_custom_call.1} parent=1 // pred_check_branch
      %45 = sbr.rel (0) target = $region25
    $region24: #{tpu_custom_call.1} parent=1 // pred_region
      _
    $region25: #{tpu_custom_call.1} parent=1 // pred_fallthru
      _
    // Predicated region
    $region26: #{tpu_custom_call.1} parent=1 // pred_check
      _
    $region27: #{tpu_custom_call.1} parent=1 // pred_check_branch
      %47 = sbr.rel (0) target = $region29
    $region28: #{tpu_custom_call.1} parent=1 // pred_region
      _
    $region29: #{tpu_custom_call.1} parent=1 // pred_fallthru
      _
    // Predicated region
    $region30: #{tpu_custom_call.1} parent=1 // pred_check
      _
    $region31: #{tpu_custom_call.1} parent=1 // pred_check_branch
      %49 = sbr.rel (0) target = $region33
    $region32: #{tpu_custom_call.1} parent=1 // pred_region
      _
    $region33: #{tpu_custom_call.1} parent=1 // pred_fallthru
      _
    // Predicated region
    $region34: #{tpu_custom_call.1} parent=1 // pred_check
      _
    $region35: #{tpu_custom_call.1} parent=1 // pred_check_branch
      %51 = sbr.rel (0) target = $region37
    $region36: #{tpu_custom_call.1} parent=1 // pred_region
      _
    $region37: #{tpu_custom_call.1} parent=1 // pred_fallthru
      _
    // Predicated region
    $region38: #{tpu_custom_call.1} parent=1 // pred_check
      _
    $region39: #{tpu_custom_call.1} parent=1 // pred_check_branch
      %53 = sbr.rel (0) target = $region41
    $region40: #{tpu_custom_call.1} parent=1 // pred_region
      _
    $region41: #{tpu_custom_call.1} parent=1 // pred_fallthru
      _
    // Predicated region
    $region42: #{tpu_custom_call.1} parent=1 // pred_check
      _
    $region43: #{tpu_custom_call.1} parent=1 // pred_check_branch
      %55 = sbr.rel (0) target = $region45
    $region44: #{tpu_custom_call.1} parent=1 // pred_region
      _
    $region45: #{tpu_custom_call.1} parent=1 // pred_fallthru
      _
    // Predicated region
    $region46: #{tpu_custom_call.1} parent=1 // pred_check
      _
    $region47: #{tpu_custom_call.1} parent=1 // pred_check_branch
      %57 = sbr.rel (0) target = $region49
    $region48: #{tpu_custom_call.1} parent=1 // pred_region
      _
    $region49: #{tpu_custom_call.1} parent=1 // pred_fallthru
      _
    // Predicated region
    $region50: #{tpu_custom_call.1} parent=1 // pred_check
      _
    $region51: #{tpu_custom_call.1} parent=1 // pred_check_branch
      %59 = sbr.rel (0) target = $region53
    $region52: #{tpu_custom_call.1} parent=1 // pred_region
      _
    $region53: #{tpu_custom_call.1} parent=1 // pred_fallthru
      _
    // Predicated region
    $region54: #{tpu_custom_call.1} parent=1 // pred_check
      _
    $region55: #{tpu_custom_call.1} parent=1 // pred_check_branch
      %61 = sbr.rel (0) target = $region57
    $region56: #{tpu_custom_call.1} parent=1 // pred_region
      _
    $region57: #{tpu_custom_call.1} parent=1 // pred_fallthru
      _
    // Predicated region
    $region58: #{tpu_custom_call.1} parent=1 // pred_check
      _
    $region59: #{tpu_custom_call.1} parent=1 // pred_check_branch
      %63 = sbr.rel (0) target = $region61
    $region60: #{tpu_custom_call.1} parent=1 // pred_region
      _
    $region61: #{tpu_custom_call.1} parent=1 // pred_fallthru
      _
    // Predicated region
    $region62: #{tpu_custom_call.1} parent=1 // pred_check
      _
    $region63: #{tpu_custom_call.1} parent=1 // pred_check_branch
      %65 = sbr.rel (0) target = $region65
    $region64: #{tpu_custom_call.1} parent=1 // pred_region
      _
    $region65: #{tpu_custom_call.1} parent=1 // pred_fallthru
      _
    // Predicated region
    $region66: #{tpu_custom_call.1} parent=1 // pred_check
      _
    $region67: #{tpu_custom_call.1} parent=1 // pred_check_branch
      %67 = sbr.rel (0) target = $region69
    $region68: #{tpu_custom_call.1} parent=1 // pred_region
      _
    $region69: #{tpu_custom_call.1} parent=1 // pred_fallthru
      _
    // Predicated region
    $region70: #{tpu_custom_call.1} parent=1 // pred_check
      _
    $region71: #{tpu_custom_call.1} parent=1 // pred_check_branch
      %69 = sbr.rel (0) target = $region73
    $region72: #{tpu_custom_call.1} parent=1 // pred_region
      _
    $region73: #{tpu_custom_call.1} parent=1 // pred_fallthru
      _
    // Predicated region
    $region74: #{tpu_custom_call.1} parent=1 // pred_check
      _
    $region75: #{tpu_custom_call.1} parent=1 // pred_check_branch
      %71 = sbr.rel (0) target = $region77
    $region76: #{tpu_custom_call.1} parent=1 // pred_region
      _
    $region77: #{tpu_custom_call.1} parent=1 // pred_fallthru
      _
    // Predicated region
    $region78: #{tpu_custom_call.1} parent=1 // pred_check
      _
    $region79: #{tpu_custom_call.1} parent=1 // pred_check_branch
      %73 = sbr.rel (0) target = $region81
    $region80: #{tpu_custom_call.1} parent=1 // pred_region
      _
    $region81: #{tpu_custom_call.1} parent=1 // pred_fallthru
      _
    // Predicated region
    $region82: #{tpu_custom_call.1} parent=1 // pred_check
      _
    $region83: #{tpu_custom_call.1} parent=1 // pred_check_branch
      %75 = sbr.rel (0) target = $region85
    $region84: #{tpu_custom_call.1} parent=1 // pred_region
      _
    $region85: #{tpu_custom_call.1} parent=1 // pred_fallthru
      _
    // Predicated region
    $region86: #{tpu_custom_call.1} parent=1 // pred_check
      _
    $region87: #{tpu_custom_call.1} parent=1 // pred_check_branch
      %77 = sbr.rel (0) target = $region89
    $region88: #{tpu_custom_call.1} parent=1 // pred_region
      _
    $region89: #{tpu_custom_call.1} parent=1 // pred_fallthru
      _
    // Predicated region
    $region90: #{tpu_custom_call.1} parent=1 // pred_check
      _
    $region91: #{tpu_custom_call.1} parent=1 // pred_check_branch
      %79 = sbr.rel (0) target = $region93
    $region92: #{tpu_custom_call.1} parent=1 // pred_region
      _
    $region93: #{tpu_custom_call.1} parent=1 // pred_fallthru
      _
    // Predicated region
    $region94: #{tpu_custom_call.1} parent=1 // pred_check
      _
    $region95: #{tpu_custom_call.1} parent=1 // pred_check_branch
      %81 = sbr.rel (0) target = $region97
    $region96: #{tpu_custom_call.1} parent=1 // pred_region
      _
    $region97: #{tpu_custom_call.1} parent=1 // pred_fallthru
      _
    // Predicated region
    $region98: #{tpu_custom_call.1} parent=1 // pred_check
      _
    $region99: #{tpu_custom_call.1} parent=1 // pred_check_branch
      %83 = sbr.rel (0) target = $region101
    $region100: #{tpu_custom_call.1} parent=1 // pred_region
      _
    $region101: #{tpu_custom_call.1} parent=1 // pred_fallthru
      _
    // Predicated region
    $region102: #{tpu_custom_call.1} parent=1 // pred_check
      _
    $region103: #{tpu_custom_call.1} parent=1 // pred_check_branch
      %85 = sbr.rel (0) target = $region105
    $region104: #{tpu_custom_call.1} parent=1 // pred_region
      _
    $region105: #{tpu_custom_call.1} parent=1 // pred_fallthru
      _
    %v87 = vld [vmem:[%s1] sm:$0xff]
    %v88 = vld [vmem:[%s1 + $0x8] sm:$0xff]
    %v89 = vld [vmem:[%s8] sm:$0xff]
    %v90 = vld [vmem:[%s9] sm:$0x1]
    %v92 = vlaneseq
    %v93 = vshrl.u32 %v92, 7
    %v94 = vsub.s32 0, %v93
    %v95 = vrot.slane %v90, %v94
    %vm97 = vcmask 64512
    %v99 = vsel %vm97, %v87, 0
    %v102 = vsel %vm97, %v88, 0
    %104 = vmatprep.subr.mxu0 0.0
    %105 = vmatpush1.msra.mxu0 %v89
    %106 = vmatprep.subr.mxu0 0.0
    %107 = vmatpush1.msra.mxu0 0.0
    %108 = vmatprep.subr.mxu0 0.0
    %109 = vmatpush1.msra.mxu0 0.0
    %110 = vmatprep.subr.mxu0 0.0
    %111 = vmatpush1.msra.mxu0 0.0
    %112 = vmatprep.subr.mxu0 0.0
    %113 = vmatpush1.msra.mxu0 0.0
    %114 = vmatprep.subr.mxu0 0.0
    %115 = vmatpush1.msra.mxu0 0.0
    %116 = vmatprep.subr.mxu0 0.0
    %117 = vmatpush1.msra.mxu0 0.0
    %118 = vmatprep.subr.mxu0 0.0
    %119 = vmatpush1.msra.mxu0 0.0
    %120 = vmatprep.subr.mxu0 0.0
    %121 = vmatpush1.msra.mxu0 0.0
    %122 = vmatprep.subr.mxu0 0.0
    %123 = vmatpush1.msra.mxu0 0.0
    %124 = vmatprep.subr.mxu0 0.0
    %125 = vmatpush1.msra.mxu0 0.0
    %126 = vmatprep.subr.mxu0 0.0
    %127 = vmatpush1.msra.mxu0 0.0
    %128 = vmatprep.subr.mxu0 0.0
    %129 = vmatpush1.msra.mxu0 0.0
    %130 = vmatprep.subr.mxu0 0.0
    %131 = vmatpush1.msra.mxu0 0.0
    %132 = vmatprep.subr.mxu0 0.0
    %133 = vmatpush1.msra.mxu0 0.0
    %134 = vmatprep.subr.mxu0 0.0
    %135 = vmatpush1.msra.mxu0 0.0
    %136 = vmatprep.subr.mxu0 0.0
    %137 = vmatpush1.msra.mxu0 0.0
    %138 = vmatprep.subr.mxu0 0.0
    %139 = vmatpush1.msra.mxu0 0.0
    %140 = vmatprep.subr.mxu0 0.0
    %141 = vmatpush1.msra.mxu0 0.0
    %142 = vmatprep.subr.mxu0 0.0
    %143 = vmatpush1.msra.mxu0 0.0
    %144 = vmatprep.subr.mxu0 0.0
    %145 = vmatpush1.msra.mxu0 0.0
    %146 = vmatprep.subr.mxu0 0.0
    %147 = vmatpush1.msra.mxu0 0.0
    %148 = vmatprep.subr.mxu0 0.0
    %149 = vmatpush1.msra.mxu0 0.0
    %150 = vmatprep.subr.mxu0 0.0
    %151 = vmatpush1.msra.mxu0 0.0
    %152 = vmatprep.subr.mxu0 0.0
    %153 = vmatpush1.msra.mxu0 0.0
    %154 = vmatprep.subr.mxu0 0.0
    %155 = vmatpush1.msra.mxu0 0.0
    %156 = vmatprep.subr.mxu0 0.0
    %157 = vmatpush1.msra.mxu0 0.0
    %158 = vmatprep.subr.mxu0 0.0
    %159 = vmatpush1.msra.mxu0 0.0
    %160 = vmatprep.subr.mxu0 0.0
    %161 = vmatpush1.msra.mxu0 0.0
    %162 = vmatprep.subr.mxu0 0.0
    %163 = vmatpush1.msra.mxu0 0.0
    %164 = vmatprep.subr.mxu0 0.0
    %165 = vmatpush1.msra.mxu0 0.0
    %166 = vmatprep.subr.mxu0 0.0
    %167 = vmatpush1.msra.mxu0 0.0
    %168 = vmatprep.mubr.f32.mxu0 0.0
    %169 = vmatmul.mubr.f32.gmra.mrb[0].mxu0 %v99
    %v170 = vpop.f32.mrb[0].mxu0
    %v171 = vadd.f32 %v95, %v170
    %v172 = vpop.f32.mrb[0].mxu0
    %173 = vmatprep.mubr.f32.mxu0 0.0
    %174 = vmatmul.mubr.f32.gmra.mrb[0].mxu0 %v102
    %v175 = vpop.f32.mrb[0].mxu0
    %v176 = vadd.f32 %v95, %v175
    %v177 = vpop.f32.mrb[0].mxu0
    %178 = vdwg.mxu0
    %v179 = vld [vmem:[%s10] sm:$0x1]
    %v180 = vld [vmem:[%s11] sm:$0x1]
    %vm181 = vcmask 261120
    %v182 = vsel %vm181, %v171, 0.0
    %v183 = vsel %vm181, %v176, 0.0
    %v184 = vadd.f32 %v182, %v183
    %v185 = vrot.slane %v184, 4
    %v186 = vadd.f32 %v184, %v185
    %v187 = vrot.slane %v186, 2
    %v188 = vadd.f32 %v186, %v187
    %v189 = vrot.slane %v188, 1
    %v190 = vadd.f32 %v188, %v189
    %v191 = vrcp.pop 16.0
    %v192 = vmul.f32 %v190, %v191
    %v193 = vsub.f32 %v171, %v192
    %v194 = vsub.f32 %v176, %v192
    %v195 = vmul.f32 %v193, %v193
    %v196 = vmul.f32 %v194, %v194
    %v197 = vsel %vm181, %v195, 0.0
    %v198 = vsel %vm181, %v196, 0.0
    %v199 = vadd.f32 %v197, %v198
    %v200 = vrot.slane %v199, 4
    %v201 = vadd.f32 %v199, %v200
    %v202 = vrot.slane %v201, 2
    %v203 = vadd.f32 %v201, %v202
    %v204 = vrot.slane %v203, 1
    %v205 = vadd.f32 %v203, %v204
    %v206 = vmul.f32 %v205, %v191
    %v207 = vadd.f32 %v206, 1e-05
    %v208 = vrsqrt.pop %v207
    %v209 = vmul.f32 %v193, %v208
    %v210 = vmul.f32 %v194, %v208
    %v212 = vlaneseq
    %v213 = vshrl.u32 %v212, 7
    %v214 = vsub.s32 0, %v213
    %v215 = vrot.slane %v179, %v214
    %v217 = vmul.f32 %v209, %v215
    %v218 = vmul.f32 %v210, %v215
    %v220 = vlaneseq
    %v221 = vshrl.u32 %v220, 7
    %v222 = vsub.s32 0, %v221
    %v223 = vrot.slane %v180, %v222
    %v225 = vadd.f32 %v217, %v223
    %v226 = vadd.f32 %v218, %v223
    %vm227 = vcmp.gt.f32.partialorder %v225, 0.0
    %vm228 = vcmp.gt.f32.partialorder %v226, 0.0
    %v229 = vmul.f32 %v225, 0.01
    %v230 = vmul.f32 %v226, 0.01
    %v231 = vsel %vm227, %v225, %v229
    %v232 = vsel %vm228, %v226, %v230
    %v233 = vld [vmem:[%s2] sm:$0xff]
    %v234 = vld [vmem:[%s2 + $0x8] sm:$0xff]
    %v235 = vld [vmem:[%s2 + $0x10] sm:$0xff]
    %v236 = vld [vmem:[%s2 + $0x18] sm:$0xff]
    %v237 = vld [vmem:[%s12] sm:$0xf]
    %v238 = vld [vmem:[%s13] sm:$0x1]
    %v240 = vlaneseq
    %v241 = vshrl.u32 %v240, 7
    %v242 = vsub.s32 0, %v241
    %v243 = vrot.slane %v238, %v242
    %vm245 = vcmask 31744
    %v247 = vsel %vm245, %v233, 0
    %v250 = vsel %vm245, %v234, 0
    %v253 = vsel %vm245, %v235, 0
    %v256 = vsel %vm245, %v236, 0
    %vm258 = vcmask 1043456
    %v260 = vsel %vm258, %v237, 0
    %262 = vmatprep.subr.mxu0 0.0
    %263 = vmatpush1.msra.mxu0 %v260
    %264 = vmatprep.subr.mxu0 0.0
    %265 = vmatpush1.msra.mxu0 0.0
    %266 = vmatprep.subr.mxu0 0.0
    %267 = vmatpush1.msra.mxu0 0.0
    %268 = vmatprep.subr.mxu0 0.0
    %269 = vmatpush1.msra.mxu0 0.0
    %270 = vmatprep.subr.mxu0 0.0
    %271 = vmatpush1.msra.mxu0 0.0
    %272 = vmatprep.subr.mxu0 0.0
    %273 = vmatpush1.msra.mxu0 0.0
    %274 = vmatprep.subr.mxu0 0.0
    %275 = vmatpush1.msra.mxu0 0.0
    %276 = vmatprep.subr.mxu0 0.0
    %277 = vmatpush1.msra.mxu0 0.0
    %278 = vmatprep.subr.mxu0 0.0
    %279 = vmatpush1.msra.mxu0 0.0
    %280 = vmatprep.subr.mxu0 0.0
    %281 = vmatpush1.msra.mxu0 0.0
    %282 = vmatprep.subr.mxu0 0.0
    %283 = vmatpush1.msra.mxu0 0.0
    %284 = vmatprep.subr.mxu0 0.0
    %285 = vmatpush1.msra.mxu0 0.0
    %286 = vmatprep.subr.mxu0 0.0
    %287 = vmatpush1.msra.mxu0 0.0
    %288 = vmatprep.subr.mxu0 0.0
    %289 = vmatpush1.msra.mxu0 0.0
    %290 = vmatprep.subr.mxu0 0.0
    %291 = vmatpush1.msra.mxu0 0.0
    %292 = vmatprep.subr.mxu0 0.0
    %293 = vmatpush1.msra.mxu0 0.0
    %294 = vmatprep.subr.mxu0 0.0
    %295 = vmatpush1.msra.mxu0 0.0
    %296 = vmatprep.subr.mxu0 0.0
    %297 = vmatpush1.msra.mxu0 0.0
    %298 = vmatprep.subr.mxu0 0.0
    %299 = vmatpush1.msra.mxu0 0.0
    %300 = vmatprep.subr.mxu0 0.0
    %301 = vmatpush1.msra.mxu0 0.0
    %302 = vmatprep.subr.mxu0 0.0
    %303 = vmatpush1.msra.mxu0 0.0
    %304 = vmatprep.subr.mxu0 0.0
    %305 = vmatpush1.msra.mxu0 0.0
    %306 = vmatprep.subr.mxu0 0.0
    %307 = vmatpush1.msra.mxu0 0.0
    %308 = vmatprep.subr.mxu0 0.0
    %309 = vmatpush1.msra.mxu0 0.0
    %310 = vmatprep.subr.mxu0 0.0
    %311 = vmatpush1.msra.mxu0 0.0
    %312 = vmatprep.subr.mxu0 0.0
    %313 = vmatpush1.msra.mxu0 0.0
    %314 = vmatprep.subr.mxu0 0.0
    %315 = vmatpush1.msra.mxu0 0.0
    %316 = vmatprep.subr.mxu0 0.0
    %317 = vmatpush1.msra.mxu0 0.0
    %318 = vmatprep.subr.mxu0 0.0
    %319 = vmatpush1.msra.mxu0 0.0
    %320 = vmatprep.subr.mxu0 0.0
    %321 = vmatpush1.msra.mxu0 0.0
    %322 = vmatprep.subr.mxu0 0.0
    %323 = vmatpush1.msra.mxu0 0.0
    %324 = vmatprep.subr.mxu0 0.0
    %325 = vmatpush1.msra.mxu0 0.0
    %326 = vmatprep.mubr.f32.mxu0 0.0
    %327 = vmatmul.mubr.f32.gmra.mrb[0].mxu0 %v247
    %v328 = vpop.f32.mrb[0].mxu0
    %v329 = vadd.f32 %v243, %v328
    %v330 = vpop.f32.mrb[0].mxu0
    %331 = vmatprep.mubr.f32.mxu0 0.0
    %332 = vmatmul.mubr.f32.gmra.mrb[0].mxu0 %v250
    %v333 = vpop.f32.mrb[0].mxu0
    %v334 = vadd.f32 %v243, %v333
    %v335 = vpop.f32.mrb[0].mxu0
    %336 = vmatprep.mubr.f32.mxu0 0.0
    %337 = vmatmul.mubr.f32.gmra.mrb[0].mxu0 %v253
    %v338 = vpop.f32.mrb[0].mxu0
    %v339 = vadd.f32 %v243, %v338
    %v340 = vpop.f32.mrb[0].mxu0
    %341 = vmatprep.mubr.f32.mxu0 0.0
    %342 = vmatmul.mubr.f32.gmra.mrb[0].mxu0 %v256
    %v343 = vpop.f32.mrb[0].mxu0
    %v344 = vadd.f32 %v243, %v343
    %v345 = vpop.f32.mrb[0].mxu0
    %346 = vdwg.mxu0
    %v347 = vld [vmem:[%s14] sm:$0x1]
    %v348 = vld [vmem:[%s15] sm:$0x1]
    %v349 = vsel %vm181, %v329, 0.0
    %v350 = vsel %vm181, %v334, 0.0
    %v351 = vadd.f32 %v349, %v350
    %v352 = vsel %vm181, %v339, 0.0
    %v353 = vadd.f32 %v351, %v352
    %v354 = vsel %vm181, %v344, 0.0
    %v355 = vadd.f32 %v353, %v354
    %v356 = vrot.slane %v355, 4
    %v357 = vadd.f32 %v355, %v356
    %v358 = vrot.slane %v357, 2
    %v359 = vadd.f32 %v357, %v358
    %v360 = vrot.slane %v359, 1
    %v361 = vadd.f32 %v359, %v360
    %v362 = vrcp.pop 32.0
    %v363 = vmul.f32 %v361, %v362
    %v364 = vsub.f32 %v329, %v363
    %v365 = vsub.f32 %v334, %v363
    %v366 = vsub.f32 %v339, %v363
    %v367 = vsub.f32 %v344, %v363
    %v368 = vmul.f32 %v364, %v364
    %v369 = vmul.f32 %v365, %v365
    %v370 = vmul.f32 %v366, %v366
    %v371 = vmul.f32 %v367, %v367
    %v372 = vsel %vm181, %v368, 0.0
    %v373 = vsel %vm181, %v369, 0.0
    %v374 = vadd.f32 %v372, %v373
    %v375 = vsel %vm181, %v370, 0.0
    %v376 = vadd.f32 %v374, %v375
    %v377 = vsel %vm181, %v371, 0.0
    %v378 = vadd.f32 %v376, %v377
    %v379 = vrot.slane %v378, 4
    %v380 = vadd.f32 %v378, %v379
    %v381 = vrot.slane %v380, 2
    %v382 = vadd.f32 %v380, %v381
    %v383 = vrot.slane %v382, 1
    %v384 = vadd.f32 %v382, %v383
    %v385 = vmul.f32 %v384, %v362
    %v386 = vadd.f32 %v385, 1e-05
    %v387 = vrsqrt.pop %v386
    %v388 = vmul.f32 %v364, %v387
    %v389 = vmul.f32 %v365, %v387
    %v390 = vmul.f32 %v366, %v387
    %v391 = vmul.f32 %v367, %v387
    %v393 = vlaneseq
    %v394 = vshrl.u32 %v393, 7
    %v395 = vsub.s32 0, %v394
    %v396 = vrot.slane %v347, %v395
    %v398 = vmul.f32 %v388, %v396
    %v399 = vmul.f32 %v389, %v396
    %v400 = vmul.f32 %v390, %v396
    %v401 = vmul.f32 %v391, %v396
    %v403 = vlaneseq
    %v404 = vshrl.u32 %v403, 7
    %v405 = vsub.s32 0, %v404
    %v406 = vrot.slane %v348, %v405
    %v408 = vadd.f32 %v398, %v406
    %v409 = vadd.f32 %v399, %v406
    %v410 = vadd.f32 %v400, %v406
    %v411 = vadd.f32 %v401, %v406
    %vm412 = vcmp.gt.f32.partialorder %v408, 0.0
    %vm413 = vcmp.gt.f32.partialorder %v409, 0.0
    %vm414 = vcmp.gt.f32.partialorder %v410, 0.0
    %vm415 = vcmp.gt.f32.partialorder %v411, 0.0
    %v416 = vmul.f32 %v408, 0.01
    %v417 = vmul.f32 %v409, 0.01
    %v418 = vmul.f32 %v410, 0.01
    %v419 = vmul.f32 %v411, 0.01
    %v420 = vsel %vm412, %v408, %v416
    %v421 = vsel %vm413, %v409, %v417
    %v422 = vsel %vm414, %v410, %v418
    %v423 = vsel %vm415, %v411, %v419
    %v424 = vld [vmem:[%s0] sm:$0xff]
    %v425 = vld [vmem:[%s0 + $0x8] sm:$0xff]
    %v426 = vld [vmem:[%s16] sm:$0xff]
    %v427 = vld [vmem:[%s16 + $0x8] sm:$0xff]
    %v428 = vld [vmem:[%s17] sm:$0xff]
    %v429 = vld [vmem:[%s17 + $0x8] sm:$0xff]
    %v430 = vld [vmem:[%s17 + $0x10] sm:$0xff]
    %v431 = vld [vmem:[%s17 + $0x18] sm:$0xff]
    %v433 = vsel %vm181, %v231, 0
    %v436 = vsel %vm181, %v232, 0
    %438 = vmatprep.subr.mxu0 0.0
    %439 = vmatpush1.msra.mxu0 %v428
    %440 = vmatprep.subr.mxu0 0.0
    %441 = vmatpush1.msra.mxu0 %v429
    %442 = vmatprep.subr.mxu0 0.0
    %443 = vmatpush1.msra.mxu0 %v430
    %444 = vmatprep.subr.mxu0 0.0
    %445 = vmatpush1.msra.mxu0 %v431
    %446 = vmatprep.subr.mxu0 0.0
    %447 = vmatpush1.msra.mxu0 0.0
    %448 = vmatprep.subr.mxu0 0.0
    %449 = vmatpush1.msra.mxu0 0.0
    %450 = vmatprep.subr.mxu0 0.0
    %451 = vmatpush1.msra.mxu0 0.0
    %452 = vmatprep.subr.mxu0 0.0
    %453 = vmatpush1.msra.mxu0 0.0
    %454 = vmatprep.subr.mxu0 0.0
    %455 = vmatpush1.msra.mxu0 0.0
    %456 = vmatprep.subr.mxu0 0.0
    %457 = vmatpush1.msra.mxu0 0.0
    %458 = vmatprep.subr.mxu0 0.0
    %459 = vmatpush1.msra.mxu0 0.0
    %460 = vmatprep.subr.mxu0 0.0
    %461 = vmatpush1.msra.mxu0 0.0
    %462 = vmatprep.subr.mxu0 0.0
    %463 = vmatpush1.msra.mxu0 0.0
    %464 = vmatprep.subr.mxu0 0.0
    %465 = vmatpush1.msra.mxu0 0.0
    %466 = vmatprep.subr.mxu0 0.0
    %467 = vmatpush1.msra.mxu0 0.0
    %468 = vmatprep.subr.mxu0 0.0
    %469 = vmatpush1.msra.mxu0 0.0
    %470 = vmatprep.subr.mxu0 0.0
    %471 = vmatpush1.msra.mxu0 0.0
    %472 = vmatprep.subr.mxu0 0.0
    %473 = vmatpush1.msra.mxu0 0.0
    %474 = vmatprep.subr.mxu0 0.0
    %475 = vmatpush1.msra.mxu0 0.0
    %476 = vmatprep.subr.mxu0 0.0
    %477 = vmatpush1.msra.mxu0 0.0
    %478 = vmatprep.subr.mxu0 0.0
    %479 = vmatpush1.msra.mxu0 0.0
    %480 = vmatprep.subr.mxu0 0.0
    %481 = vmatpush1.msra.mxu0 0.0
    %482 = vmatprep.subr.mxu0 0.0
    %483 = vmatpush1.msra.mxu0 0.0
    %484 = vmatprep.subr.mxu0 0.0
    %485 = vmatpush1.msra.mxu0 0.0
    %486 = vmatprep.subr.mxu0 0.0
    %487 = vmatpush1.msra.mxu0 0.0
    %488 = vmatprep.subr.mxu0 0.0
    %489 = vmatpush1.msra.mxu0 0.0
    %490 = vmatprep.subr.mxu0 0.0
    %491 = vmatpush1.msra.mxu0 0.0
    %492 = vmatprep.subr.mxu0 0.0
    %493 = vmatpush1.msra.mxu0 0.0
    %494 = vmatprep.subr.mxu0 0.0
    %495 = vmatpush1.msra.mxu0 0.0
    %496 = vmatprep.subr.mxu0 0.0
    %497 = vmatpush1.msra.mxu0 0.0
    %498 = vmatprep.subr.mxu0 0.0
    %499 = vmatpush1.msra.mxu0 0.0
    %500 = vmatprep.subr.mxu0 0.0
    %501 = vmatpush1.msra.mxu0 0.0
    %502 = vmatprep.mubr.f32.mxu0 0.0
    %503 = vmatmul.mubr.f32.gmra.mrb[0].mxu0 %v433
    %v504 = vpop.f32.mrb[0].mxu0
    %v505 = vadd.f32 0.0, %v504
    %v506 = vpop.f32.mrb[0].mxu0
    %507 = vmatprep.mubr.f32.mxu0 0.0
    %508 = vmatmul.mubr.f32.gmra.mrb[0].mxu0 %v436
    %v509 = vpop.f32.mrb[0].mxu0
    %v510 = vadd.f32 0.0, %v509
    %v511 = vpop.f32.mrb[0].mxu0
    %512 = vdwg.mxu0
    %vm513 = vcmask 130048
    %v515 = vsel %vm513, %v424, 0
    %v518 = vsel %vm513, %v425, 0
    %520 = vmatprep.subr.mxu0 0.0
    %521 = vmatpush1.msra.mxu0 %v426
    %522 = vmatprep.subr.mxu0 0.0
    %523 = vmatpush1.msra.mxu0 %v427
    %524 = vmatprep.subr.mxu0 0.0
    %525 = vmatpush1.msra.mxu0 0.0
    %526 = vmatprep.subr.mxu0 0.0
    %527 = vmatpush1.msra.mxu0 0.0
    %528 = vmatprep.subr.mxu0 0.0
    %529 = vmatpush1.msra.mxu0 0.0
    %530 = vmatprep.subr.mxu0 0.0
    %531 = vmatpush1.msra.mxu0 0.0
    %532 = vmatprep.subr.mxu0 0.0
    %533 = vmatpush1.msra.mxu0 0.0
    %534 = vmatprep.subr.mxu0 0.0
    %535 = vmatpush1.msra.mxu0 0.0
    %536 = vmatprep.subr.mxu0 0.0
    %537 = vmatpush1.msra.mxu0 0.0
    %538 = vmatprep.subr.mxu0 0.0
    %539 = vmatpush1.msra.mxu0 0.0
    %540 = vmatprep.subr.mxu0 0.0
    %541 = vmatpush1.msra.mxu0 0.0
    %542 = vmatprep.subr.mxu0 0.0
    %543 = vmatpush1.msra.mxu0 0.0
    %544 = vmatprep.subr.mxu0 0.0
    %545 = vmatpush1.msra.mxu0 0.0
    %546 = vmatprep.subr.mxu0 0.0
    %547 = vmatpush1.msra.mxu0 0.0
    %548 = vmatprep.subr.mxu0 0.0
    %549 = vmatpush1.msra.mxu0 0.0
    %550 = vmatprep.subr.mxu0 0.0
    %551 = vmatpush1.msra.mxu0 0.0
    %552 = vmatprep.subr.mxu0 0.0
    %553 = vmatpush1.msra.mxu0 0.0
    %554 = vmatprep.subr.mxu0 0.0
    %555 = vmatpush1.msra.mxu0 0.0
    %556 = vmatprep.subr.mxu0 0.0
    %557 = vmatpush1.msra.mxu0 0.0
    %558 = vmatprep.subr.mxu0 0.0
    %559 = vmatpush1.msra.mxu0 0.0
    %560 = vmatprep.subr.mxu0 0.0
    %561 = vmatpush1.msra.mxu0 0.0
    %562 = vmatprep.subr.mxu0 0.0
    %563 = vmatpush1.msra.mxu0 0.0
    %564 = vmatprep.subr.mxu0 0.0
    %565 = vmatpush1.msra.mxu0 0.0
    %566 = vmatprep.subr.mxu0 0.0
    %567 = vmatpush1.msra.mxu0 0.0
    %568 = vmatprep.subr.mxu0 0.0
    %569 = vmatpush1.msra.mxu0 0.0
    %570 = vmatprep.subr.mxu0 0.0
    %571 = vmatpush1.msra.mxu0 0.0
    %572 = vmatprep.subr.mxu0 0.0
    %573 = vmatpush1.msra.mxu0 0.0
    %574 = vmatprep.subr.mxu0 0.0
    %575 = vmatpush1.msra.mxu0 0.0
    %576 = vmatprep.subr.mxu0 0.0
    %577 = vmatpush1.msra.mxu0 0.0
    %578 = vmatprep.subr.mxu0 0.0
    %579 = vmatpush1.msra.mxu0 0.0
    %580 = vmatprep.subr.mxu0 0.0
    %581 = vmatpush1.msra.mxu0 0.0
    %582 = vmatprep.subr.mxu0 0.0
    %583 = vmatpush1.msra.mxu0 0.0
    %584 = vmatprep.mubr.f32.mxu0 0.0
    %585 = vmatmul.mubr.f32.gmra.mrb[0].mxu0 %v515
    %v586 = vpop.f32.mrb[0].mxu0
    %v587 = vadd.f32 %v505, %v586
    %v588 = vpop.f32.mrb[0].mxu0
    %589 = vmatprep.mubr.f32.mxu0 0.0
    %590 = vmatmul.mubr.f32.gmra.mrb[0].mxu0 %v518
    %v591 = vpop.f32.mrb[0].mxu0
    %v592 = vadd.f32 %v510, %v591
    %v593 = vpop.f32.mrb[0].mxu0
    %594 = vdwg.mxu0
    %v595 = vld [vmem:[%s18] sm:$0x1]
    %v597 = vlaneseq
    %v598 = vshrl.u32 %v597, 7
    %v599 = vsub.s32 0, %v598
    %v600 = vrot.slane %v595, %v599
    %v602 = vadd.f32 %v587, %v600
    %v603 = vadd.f32 %v592, %v600
    %v604 = vld [vmem:[%s19] sm:$0xff]
    %v605 = vld [vmem:[%s19 + $0x8] sm:$0xff]
    %v606 = vld [vmem:[%s19 + $0x10] sm:$0xff]
    %v607 = vld [vmem:[%s19 + $0x18] sm:$0xff]
    %v608 = vld [vmem:[%s19 + $0x20] sm:$0xff]
    %v609 = vld [vmem:[%s19 + $0x28] sm:$0xff]
    %v610 = vld [vmem:[%s19 + $0x30] sm:$0xff]
    %v611 = vld [vmem:[%s19 + $0x38] sm:$0xff]
    %vm612 = vcmask 523264
    %v614 = vsel %vm612, %v602, 0
    %v617 = vsel %vm612, %v603, 0
    %619 = vmatprep.subr.mxu0 0.0
    %620 = vmatpush1.msra.mxu0 %v604
    %621 = vmatprep.subr.mxu0 0.0
    %622 = vmatpush1.msra.mxu0 %v605
    %623 = vmatprep.subr.mxu0 0.0
    %624 = vmatpush1.msra.mxu0 %v606
    %625 = vmatprep.subr.mxu0 0.0
    %626 = vmatpush1.msra.mxu0 %v607
    %627 = vmatprep.subr.mxu0 0.0
    %628 = vmatpush1.msra.mxu0 %v608
    %629 = vmatprep.subr.mxu0 0.0
    %630 = vmatpush1.msra.mxu0 %v609
    %631 = vmatprep.subr.mxu0 0.0
    %632 = vmatpush1.msra.mxu0 %v610
    %633 = vmatprep.subr.mxu0 0.0
    %634 = vmatpush1.msra.mxu0 %v611
    %635 = vmatprep.subr.mxu0 0.0
    %636 = vmatpush1.msra.mxu0 0.0
    %637 = vmatprep.subr.mxu0 0.0
    %638 = vmatpush1.msra.mxu0 0.0
    %639 = vmatprep.subr.mxu0 0.0
    %640 = vmatpush1.msra.mxu0 0.0
    %641 = vmatprep.subr.mxu0 0.0
    %642 = vmatpush1.msra.mxu0 0.0
    %643 = vmatprep.subr.mxu0 0.0
    %644 = vmatpush1.msra.mxu0 0.0
    %645 = vmatprep.subr.mxu0 0.0
    %646 = vmatpush1.msra.mxu0 0.0
    %647 = vmatprep.subr.mxu0 0.0
    %648 = vmatpush1.msra.mxu0 0.0
    %649 = vmatprep.subr.mxu0 0.0
    %650 = vmatpush1.msra.mxu0 0.0
    %651 = vmatprep.subr.mxu0 0.0
    %652 = vmatpush1.msra.mxu0 0.0
    %653 = vmatprep.subr.mxu0 0.0
    %654 = vmatpush1.msra.mxu0 0.0
    %655 = vmatprep.subr.mxu0 0.0
    %656 = vmatpush1.msra.mxu0 0.0
    %657 = vmatprep.subr.mxu0 0.0
    %658 = vmatpush1.msra.mxu0 0.0
    %659 = vmatprep.subr.mxu0 0.0
    %660 = vmatpush1.msra.mxu0 0.0
    %661 = vmatprep.subr.mxu0 0.0
    %662 = vmatpush1.msra.mxu0 0.0
    %663 = vmatprep.subr.mxu0 0.0
    %664 = vmatpush1.msra.mxu0 0.0
    %665 = vmatprep.subr.mxu0 0.0
    %666 = vmatpush1.msra.mxu0 0.0
    %667 = vmatprep.subr.mxu0 0.0
    %668 = vmatpush1.msra.mxu0 0.0
    %669 = vmatprep.subr.mxu0 0.0
    %670 = vmatpush1.msra.mxu0 0.0
    %671 = vmatprep.subr.mxu0 0.0
    %672 = vmatpush1.msra.mxu0 0.0
    %673 = vmatprep.subr.mxu0 0.0
    %674 = vmatpush1.msra.mxu0 0.0
    %675 = vmatprep.subr.mxu0 0.0
    %676 = vmatpush1.msra.mxu0 0.0
    %677 = vmatprep.subr.mxu0 0.0
    %678 = vmatpush1.msra.mxu0 0.0
    %679 = vmatprep.subr.mxu0 0.0
    %680 = vmatpush1.msra.mxu0 0.0
    %681 = vmatprep.subr.mxu0 0.0
    %682 = vmatpush1.msra.mxu0 0.0
    %683 = vmatprep.mubr.f32.mxu0 0.0
    %684 = vmatmul.mubr.f32.gmra.mrb[0].mxu0 %v614
    %v685 = vpop.f32.mrb[0].mxu0
    %v686 = vadd.f32 0.0, %v685
    %v687 = vpop.f32.mrb[0].mxu0
    %688 = vmatprep.mubr.f32.mxu0 0.0
    %689 = vmatmul.mubr.f32.gmra.mrb[0].mxu0 %v617
    %v690 = vpop.f32.mrb[0].mxu0
    %v691 = vadd.f32 0.0, %v690
    %v692 = vpop.f32.mrb[0].mxu0
    %693 = vdwg.mxu0
    %v694 = vld [vmem:[%s21] sm:$0xff]
    %v695 = vld [vmem:[%s21 + $0x8] sm:$0xff]
    %v696 = vld [vmem:[%s21 + $0x10] sm:$0xff]
    %v697 = vld [vmem:[%s21 + $0x18] sm:$0xff]
    %v698 = vld [vmem:[%s21 + $0x20] sm:$0xff]
    %v699 = vld [vmem:[%s21 + $0x28] sm:$0xff]
    %v700 = vld [vmem:[%s21 + $0x30] sm:$0xff]
    %v701 = vld [vmem:[%s21 + $0x38] sm:$0xff]
    %702 = vmatprep.subr.mxu0 0.0
    %703 = vmatpush1.msra.mxu0 %v694
    %704 = vmatprep.subr.mxu0 0.0
    %705 = vmatpush1.msra.mxu0 %v695
    %706 = vmatprep.subr.mxu0 0.0
    %707 = vmatpush1.msra.mxu0 %v696
    %708 = vmatprep.subr.mxu0 0.0
    %709 = vmatpush1.msra.mxu0 %v697
    %710 = vmatprep.subr.mxu0 0.0
    %711 = vmatpush1.msra.mxu0 %v698
    %712 = vmatprep.subr.mxu0 0.0
    %713 = vmatpush1.msra.mxu0 %v699
    %714 = vmatprep.subr.mxu0 0.0
    %715 = vmatpush1.msra.mxu0 %v700
    %716 = vmatprep.subr.mxu0 0.0
    %717 = vmatpush1.msra.mxu0 %v701
    %718 = vmatprep.subr.mxu0 0.0
    %719 = vmatpush1.msra.mxu0 0.0
    %720 = vmatprep.subr.mxu0 0.0
    %721 = vmatpush1.msra.mxu0 0.0
    %722 = vmatprep.subr.mxu0 0.0
    %723 = vmatpush1.msra.mxu0 0.0
    %724 = vmatprep.subr.mxu0 0.0
    %725 = vmatpush1.msra.mxu0 0.0
    %726 = vmatprep.subr.mxu0 0.0
    %727 = vmatpush1.msra.mxu0 0.0
    %728 = vmatprep.subr.mxu0 0.0
    %729 = vmatpush1.msra.mxu0 0.0
    %730 = vmatprep.subr.mxu0 0.0
    %731 = vmatpush1.msra.mxu0 0.0
    %732 = vmatprep.subr.mxu0 0.0
    %733 = vmatpush1.msra.mxu0 0.0
    %734 = vmatprep.subr.mxu0 0.0
    %735 = vmatpush1.msra.mxu0 0.0
    %736 = vmatprep.subr.mxu0 0.0
    %737 = vmatpush1.msra.mxu0 0.0
    %738 = vmatprep.subr.mxu0 0.0
    %739 = vmatpush1.msra.mxu0 0.0
    %740 = vmatprep.subr.mxu0 0.0
    %741 = vmatpush1.msra.mxu0 0.0
    %742 = vmatprep.subr.mxu0 0.0
    %743 = vmatpush1.msra.mxu0 0.0
    %744 = vmatprep.subr.mxu0 0.0
    %745 = vmatpush1.msra.mxu0 0.0
    %746 = vmatprep.subr.mxu0 0.0
    %747 = vmatpush1.msra.mxu0 0.0
    %748 = vmatprep.subr.mxu0 0.0
    %749 = vmatpush1.msra.mxu0 0.0
    %750 = vmatprep.subr.mxu0 0.0
    %751 = vmatpush1.msra.mxu0 0.0
    %752 = vmatprep.subr.mxu0 0.0
    %753 = vmatpush1.msra.mxu0 0.0
    %754 = vmatprep.subr.mxu0 0.0
    %755 = vmatpush1.msra.mxu0 0.0
    %756 = vmatprep.subr.mxu0 0.0
    %757 = vmatpush1.msra.mxu0 0.0
    %758 = vmatprep.subr.mxu0 0.0
    %759 = vmatpush1.msra.mxu0 0.0
    %760 = vmatprep.subr.mxu0 0.0
    %761 = vmatpush1.msra.mxu0 0.0
    %762 = vmatprep.subr.mxu0 0.0
    %763 = vmatpush1.msra.mxu0 0.0
    %764 = vmatprep.subr.mxu0 0.0
    %765 = vmatpush1.msra.mxu0 0.0
    %766 = vmatprep.mubr.f32.mxu0 0.0
    %767 = vmatmul.mubr.f32.gmra.mrb[0].mxu0 %v614
    %v768 = vpop.f32.mrb[0].mxu0
    %v769 = vadd.f32 0.0, %v768
    %v770 = vpop.f32.mrb[0].mxu0
    %771 = vmatprep.mubr.f32.mxu0 0.0
    %772 = vmatmul.mubr.f32.gmra.mrb[0].mxu0 %v617
    %v773 = vpop.f32.mrb[0].mxu0
    %v774 = vadd.f32 0.0, %v773
    %v775 = vpop.f32.mrb[0].mxu0
    %776 = vdwg.mxu0
    %v777 = vld [vmem:[%s20] sm:$0xff]
    %v778 = vld [vmem:[%s20 + $0x8] sm:$0xff]
    %v779 = vld [vmem:[%s20 + $0x10] sm:$0xff]
    %v780 = vld [vmem:[%s20 + $0x18] sm:$0xff]
    %v782 = vsel %vm181, %v420, 0
    %v785 = vsel %vm181, %v421, 0
    %v788 = vsel %vm181, %v422, 0
    %v791 = vsel %vm181, %v423, 0
    %793 = vmatprep.subr.mxu0 0.0
    %794 = vmatpush1.msra.mxu0 %v777
    %795 = vmatprep.subr.mxu0 0.0
    %796 = vmatpush1.msra.mxu0 %v778
    %797 = vmatprep.subr.mxu0 0.0
    %798 = vmatpush1.msra.mxu0 %v779
    %799 = vmatprep.subr.mxu0 0.0
    %800 = vmatpush1.msra.mxu0 %v780
    %801 = vmatprep.subr.mxu0 0.0
    %802 = vmatpush1.msra.mxu0 0.0
    %803 = vmatprep.subr.mxu0 0.0
    %804 = vmatpush1.msra.mxu0 0.0
    %805 = vmatprep.subr.mxu0 0.0
    %806 = vmatpush1.msra.mxu0 0.0
    %807 = vmatprep.subr.mxu0 0.0
    %808 = vmatpush1.msra.mxu0 0.0
    %809 = vmatprep.subr.mxu0 0.0
    %810 = vmatpush1.msra.mxu0 0.0
    %811 = vmatprep.subr.mxu0 0.0
    %812 = vmatpush1.msra.mxu0 0.0
    %813 = vmatprep.subr.mxu0 0.0
    %814 = vmatpush1.msra.mxu0 0.0
    %815 = vmatprep.subr.mxu0 0.0
    %816 = vmatpush1.msra.mxu0 0.0
    %817 = vmatprep.subr.mxu0 0.0
    %818 = vmatpush1.msra.mxu0 0.0
    %819 = vmatprep.subr.mxu0 0.0
    %820 = vmatpush1.msra.mxu0 0.0
    %821 = vmatprep.subr.mxu0 0.0
    %822 = vmatpush1.msra.mxu0 0.0
    %823 = vmatprep.subr.mxu0 0.0
    %824 = vmatpush1.msra.mxu0 0.0
    %825 = vmatprep.subr.mxu0 0.0
    %826 = vmatpush1.msra.mxu0 0.0
    %827 = vmatprep.subr.mxu0 0.0
    %828 = vmatpush1.msra.mxu0 0.0
    %829 = vmatprep.subr.mxu0 0.0
    %830 = vmatpush1.msra.mxu0 0.0
    %831 = vmatprep.subr.mxu0 0.0
    %832 = vmatpush1.msra.mxu0 0.0
    %833 = vmatprep.subr.mxu0 0.0
    %834 = vmatpush1.msra.mxu0 0.0
    %835 = vmatprep.subr.mxu0 0.0
    %836 = vmatpush1.msra.mxu0 0.0
    %837 = vmatprep.subr.mxu0 0.0
    %838 = vmatpush1.msra.mxu0 0.0
    %839 = vmatprep.subr.mxu0 0.0
    %840 = vmatpush1.msra.mxu0 0.0
    %841 = vmatprep.subr.mxu0 0.0
    %842 = vmatpush1.msra.mxu0 0.0
    %843 = vmatprep.subr.mxu0 0.0
    %844 = vmatpush1.msra.mxu0 0.0
    %845 = vmatprep.subr.mxu0 0.0
    %846 = vmatpush1.msra.mxu0 0.0
    %847 = vmatprep.subr.mxu0 0.0
    %848 = vmatpush1.msra.mxu0 0.0
    %849 = vmatprep.subr.mxu0 0.0
    %850 = vmatpush1.msra.mxu0 0.0
    %851 = vmatprep.subr.mxu0 0.0
    %852 = vmatpush1.msra.mxu0 0.0
    %853 = vmatprep.subr.mxu0 0.0
    %854 = vmatpush1.msra.mxu0 0.0
    %855 = vmatprep.subr.mxu0 0.0
    %856 = vmatpush1.msra.mxu0 0.0
    %857 = vmatprep.mubr.f32.mxu0 0.0
    %858 = vmatmul.mubr.f32.gmra.mrb[0].mxu0 %v782
    %v859 = vpop.f32.mrb[0].mxu0
    %v860 = vadd.f32 0.0, %v859
    %v861 = vpop.f32.mrb[0].mxu0
    %862 = vmatprep.mubr.f32.mxu0 0.0
    %863 = vmatmul.mubr.f32.gmra.mrb[0].mxu0 %v785
    %v864 = vpop.f32.mrb[0].mxu0
    %v865 = vadd.f32 0.0, %v864
    %v866 = vpop.f32.mrb[0].mxu0
    %867 = vmatprep.mubr.f32.mxu0 0.0
    %868 = vmatmul.mubr.f32.gmra.mrb[0].mxu0 %v788
    %v869 = vpop.f32.mrb[0].mxu0
    %v870 = vadd.f32 0.0, %v869
    %v871 = vpop.f32.mrb[0].mxu0
    %872 = vmatprep.mubr.f32.mxu0 0.0
    %873 = vmatmul.mubr.f32.gmra.mrb[0].mxu0 %v791
    %v874 = vpop.f32.mrb[0].mxu0
    %v875 = vadd.f32 0.0, %v874
    %v876 = vpop.f32.mrb[0].mxu0
    %877 = vdwg.mxu0
    %v878 = vlaneseq
    %v879 = vand.u32 %v878, 127
    %v880 = vld [vmem:[%s3] sm:$0xff]
    %v881 = vld [vmem:[%s3 + $0x8] sm:$0xff]
    %v882 = vld [vmem:[%s3 + $0x10] sm:$0xff]
    %v883 = vld [vmem:[%s3 + $0x18] sm:$0xff]
    %884 = vset.pattern.permute.xlu0 0
    %885 = vperm.xlu0 %884, %v880
    %v886 = vpop.permute.xlu0 %885
    %887 = vset.pattern.permute.xlu0 0
    %888 = vperm.xlu0 %887, %v881
    %v889 = vpop.permute.xlu0 %888
    %890 = vset.pattern.permute.xlu0 0
    %891 = vperm.xlu0 %890, %v882
    %v892 = vpop.permute.xlu0 %891
    %893 = vset.pattern.permute.xlu0 0
    %894 = vperm.xlu0 %893, %v883
    %v895 = vpop.permute.xlu0 %894
    %vm896 = vcmp.eq.s32.totalorder %v879, %v886
    %vm897 = vcmp.eq.s32.totalorder %v879, %v889
    %vm898 = vcmp.eq.s32.totalorder %v879, %v892
    %vm899 = vcmp.eq.s32.totalorder %v879, %v895
    %v900 = vld [vmem:[%s4] sm:$0xff]
    %v901 = vld [vmem:[%s4 + $0x8] sm:$0xff]
    %v902 = vld [vmem:[%s4 + $0x10] sm:$0xff]
    %v903 = vld [vmem:[%s4 + $0x18] sm:$0xff]
    %904 = vset.pattern.permute.xlu0 0
    %905 = vperm.xlu0 %904, %v900
    %v906 = vpop.permute.xlu0 %905
    %907 = vset.pattern.permute.xlu0 0
    %908 = vperm.xlu0 %907, %v901
    %v909 = vpop.permute.xlu0 %908
    %910 = vset.pattern.permute.xlu0 0
    %911 = vperm.xlu0 %910, %v902
    %v912 = vpop.permute.xlu0 %911
    %913 = vset.pattern.permute.xlu0 0
    %914 = vperm.xlu0 %913, %v903
    %v915 = vpop.permute.xlu0 %914
    %vm916 = vcmp.eq.s32.totalorder %v879, %v906
    %vm917 = vcmp.eq.s32.totalorder %v879, %v909
    %vm918 = vcmp.eq.s32.totalorder %v879, %v912
    %vm919 = vcmp.eq.s32.totalorder %v879, %v915
    %v920 = vsel %vm896, 1.0, 0.0
    %v921 = vsel %vm897, 1.0, 0.0
    %v922 = vsel %vm898, 1.0, 0.0
    %v923 = vsel %vm899, 1.0, 0.0
    %v924 = vpack.c.bf16 %v921, %v920
    %v925 = vpack.c.bf16 %v923, %v922
    %v926 = vsel %vm916, 1.0, 0.0
    %v927 = vsel %vm917, 1.0, 0.0
    %v928 = vsel %vm918, 1.0, 0.0
    %v929 = vsel %vm919, 1.0, 0.0
    %v930 = vpack.c.bf16 %v927, %v926
    %v931 = vpack.c.bf16 %v929, %v928
    %v932 = vsel %vm916, 0.0, -1e+30
    %v933 = vsel %vm917, 0.0, -1e+30
    %v934 = vsel %vm918, 0.0, -1e+30
    %v935 = vsel %vm919, 0.0, -1e+30
    %v936 = vlaneseq
    %v937 = vshrl.u32 %v936, 7
    %v938 = vadd.s32 %v937, 8
    %v939 = vld [vmem:[%s5] sm:$0x1]
    %v940 = vlaneseq
    %v941 = vshrl.u32 %v940, 7
    %v942 = vsub.s32 0, %v941
    %v943 = vrot.slane %v939, %v942
    %vm944 = vcmp.eq.s32.totalorder %v937, %v943
    %vm945 = vcmp.eq.s32.totalorder %v938, %v943
    %v946 = vsel %vm944, 1.0, 0.0
    %v947 = vsel %vm945, 1.0, 0.0
    %v948 = vpack.c.bf16 %v947, %v946
    %v949 = vld [vmem:[%s6] sm:$0xff]
    %v950 = vld [vmem:[%s6 + $0x8] sm:$0xff]
    %951 = vset.pattern.permute.xlu0 0
    %952 = vperm.xlu0 %951, %v949
    %v953 = vpop.permute.xlu0 %952
    %954 = vset.pattern.permute.xlu0 0
    %955 = vperm.xlu0 %954, %v950
    %v956 = vpop.permute.xlu0 %955
    %vm957 = vcmp.eq.s32.totalorder %v879, %v953
    %vm958 = vcmp.eq.s32.totalorder %v879, %v956
    %v959 = vsel %vm957, 1.0, 0.0
    %v960 = vsel %vm958, 1.0, 0.0
    %v961 = vpack.c.bf16 %v960, %v959
    %v962 = vld [vmem:[%s7] sm:$0x1]
    %v963 = vlaneseq
    %v964 = vshrl.u32 %v963, 7
    %v965 = vsub.s32 0, %v964
    %v966 = vrot.slane %v962, %v965
    %vm967 = vcmp.eq.s32.totalorder %v937, %v966
    %v968 = vsel %vm967, 1.0, 0.0
    %v969 = vpack.c.bf16 %v968, %v968
    %972 = vrot.lane.b32.xlu0 %v769, 2
    %v973 = vpop.permute.xlu0 %972
    %974 = vrot.lane.b32.xlu0 %v774, 2
    %v975 = vpop.permute.xlu0 %974
    %vm978 = vcmask 15360
    %v979 = vsel %vm978, %v686, %v973
    %v980 = vsel %vm978, %v691, %v975
    %v981 = vpack.c.bf16 %v980, %v979
    %v983 = vsel %vm513, %v924, 0
    %v986 = vsel %vm513, %v925, 0
    %988 = vmatprep.subr.bf16.mxu0 0
    %989 = vmatpush1.bf16.msra.mxu0 %v981
    %990 = vmatprep.subr.bf16.mxu0 0
    %991 = vmatpush1.bf16.msra.mxu0 0
    %992 = vmatprep.subr.bf16.mxu0 0
    %993 = vmatpush1.bf16.msra.mxu0 0
    %994 = vmatprep.subr.bf16.mxu0 0
    %995 = vmatpush1.bf16.msra.mxu0 0
    %996 = vmatprep.subr.bf16.mxu0 0
    %997 = vmatpush1.bf16.msra.mxu0 0
    %998 = vmatprep.subr.bf16.mxu0 0
    %999 = vmatpush1.bf16.msra.mxu0 0
    %1000 = vmatprep.subr.bf16.mxu0 0
    %1001 = vmatpush1.bf16.msra.mxu0 0
    %1002 = vmatprep.subr.bf16.mxu0 0
    %1003 = vmatpush1.bf16.msra.mxu0 0
    %1004 = vmatprep.subr.bf16.mxu0 0
    %1005 = vmatpush1.bf16.msra.mxu0 0
    %1006 = vmatprep.subr.bf16.mxu0 0
    %1007 = vmatpush1.bf16.msra.mxu0 0
    %1008 = vmatprep.subr.bf16.mxu0 0
    %1009 = vmatpush1.bf16.msra.mxu0 0
    %1010 = vmatprep.subr.bf16.mxu0 0
    %1011 = vmatpush1.bf16.msra.mxu0 0
    %1012 = vmatprep.subr.bf16.mxu0 0
    %1013 = vmatpush1.bf16.msra.mxu0 0
    %1014 = vmatprep.subr.bf16.mxu0 0
    %1015 = vmatpush1.bf16.msra.mxu0 0
    %1016 = vmatprep.subr.bf16.mxu0 0
    %1017 = vmatpush1.bf16.msra.mxu0 0
    %1018 = vmatprep.subr.bf16.mxu0 0
    %1019 = vmatpush1.bf16.msra.mxu0 0
    %1020 = vmatprep.mubr.bf16.mxu0 0
    %1021 = vmatmul.mubr.bf16.gmra.mrb[0].mxu0 %v983
    %v1022 = vpop.f32.mrb[0].mxu0
    %v1023 = vadd.f32 0.0, %v1022
    %v1024 = vpop.f32.mrb[0].mxu0
    %v1025 = vpop.f32.mrb[0].mxu0
    %v1026 = vadd.f32 0.0, %v1025
    %v1027 = vpop.f32.mrb[0].mxu0
    %1028 = vmatprep.mubr.bf16.mxu0 0
    %1029 = vmatmul.mubr.bf16.gmra.mrb[0].mxu0 %v986
    %v1030 = vpop.f32.mrb[0].mxu0
    %v1031 = vadd.f32 0.0, %v1030
    %v1032 = vpop.f32.mrb[0].mxu0
    %v1033 = vpop.f32.mrb[0].mxu0
    %v1034 = vadd.f32 0.0, %v1033
    %v1035 = vpop.f32.mrb[0].mxu0
    %1036 = vdwg.mxu0
    %v1037 = vadd.f32 %v1023, %v860
    %v1038 = vadd.f32 %v1026, %v865
    %v1039 = vadd.f32 %v1031, %v870
    %v1040 = vadd.f32 %v1034, %v875
    %v1041 = vpack.c.bf16 %v691, %v686
    %1043 = vrot.lane.b32.xlu0 %v1041, 126
    %v1044 = vpop.permute.xlu0 %1043
    %v1047 = vsel %vm513, %v930, 0
    %v1050 = vsel %vm513, %v931, 0
    %1052 = vmatprep.subr.bf16.mxu0 0
    %1053 = vmatpush1.bf16.msra.mxu0 %v1044
    %1054 = vmatprep.subr.bf16.mxu0 0
    %1055 = vmatpush1.bf16.msra.mxu0 0
    %1056 = vmatprep.subr.bf16.mxu0 0
    %1057 = vmatpush1.bf16.msra.mxu0 0
    %1058 = vmatprep.subr.bf16.mxu0 0
    %1059 = vmatpush1.bf16.msra.mxu0 0
    %1060 = vmatprep.subr.bf16.mxu0 0
    %1061 = vmatpush1.bf16.msra.mxu0 0
    %1062 = vmatprep.subr.bf16.mxu0 0
    %1063 = vmatpush1.bf16.msra.mxu0 0
    %1064 = vmatprep.subr.bf16.mxu0 0
    %1065 = vmatpush1.bf16.msra.mxu0 0
    %1066 = vmatprep.subr.bf16.mxu0 0
    %1067 = vmatpush1.bf16.msra.mxu0 0
    %1068 = vmatprep.subr.bf16.mxu0 0
    %1069 = vmatpush1.bf16.msra.mxu0 0
    %1070 = vmatprep.subr.bf16.mxu0 0
    %1071 = vmatpush1.bf16.msra.mxu0 0
    %1072 = vmatprep.subr.bf16.mxu0 0
    %1073 = vmatpush1.bf16.msra.mxu0 0
    %1074 = vmatprep.subr.bf16.mxu0 0
    %1075 = vmatpush1.bf16.msra.mxu0 0
    %1076 = vmatprep.subr.bf16.mxu0 0
    %1077 = vmatpush1.bf16.msra.mxu0 0
    %1078 = vmatprep.subr.bf16.mxu0 0
    %1079 = vmatpush1.bf16.msra.mxu0 0
    %1080 = vmatprep.subr.bf16.mxu0 0
    %1081 = vmatpush1.bf16.msra.mxu0 0
    %1082 = vmatprep.subr.bf16.mxu0 0
    %1083 = vmatpush1.bf16.msra.mxu0 0
    %1084 = vmatprep.mubr.bf16.mxu0 0
    %1085 = vmatmul.mubr.bf16.gmra.mrb[0].mxu0 %v1047
    %v1086 = vpop.f32.mrb[0].mxu0
    %v1087 = vadd.f32 0.0, %v1086
    %v1088 = vpop.f32.mrb[0].mxu0
    %v1089 = vpop.f32.mrb[0].mxu0
    %v1090 = vadd.f32 0.0, %v1089
    %v1091 = vpop.f32.mrb[0].mxu0
    %1092 = vmatprep.mubr.bf16.mxu0 0
    %1093 = vmatmul.mubr.bf16.gmra.mrb[0].mxu0 %v1050
    %v1094 = vpop.f32.mrb[0].mxu0
    %v1095 = vadd.f32 0.0, %v1094
    %v1096 = vpop.f32.mrb[0].mxu0
    %v1097 = vpop.f32.mrb[0].mxu0
    %v1098 = vadd.f32 0.0, %v1097
    %v1099 = vpop.f32.mrb[0].mxu0
    %1100 = vdwg.mxu0
    %1102 = vset.pattern.permute.xlu0 0
    %1103 = vperm.xlu0 %1102, %v1037
    %v1104 = vpop.permute.xlu0 %1103
    %1107 = vset.pattern.permute.xlu0 0
    %1108 = vperm.xlu0 %1107, %v1038
    %v1109 = vpop.permute.xlu0 %1108
    %1112 = vset.pattern.permute.xlu0 0
    %1113 = vperm.xlu0 %1112, %v1039
    %v1114 = vpop.permute.xlu0 %1113
    %1117 = vset.pattern.permute.xlu0 0
    %1118 = vperm.xlu0 %1117, %v1040
    %v1119 = vpop.permute.xlu0 %1118
    %v1121 = vadd.f32 %v1104, %v932
    %v1122 = vadd.f32 %v1109, %v933
    %v1123 = vadd.f32 %v1114, %v934
    %v1124 = vadd.f32 %v1119, %v935
    %v1125 = vsel %vm513, %v1121, -inf
    %v1126 = vsel %vm513, %v1122, -inf
    %v1127 = vsel %vm513, %v1123, -inf
    %v1128 = vsel %vm513, %v1124, -inf
    %v1129 = vmax.f32 %v1125, %v1126
    %v1130 = vmax.f32 %v1127, %v1128
    %v1131 = vmax.f32 %v1129, %v1130
    %v1132 = vrot.slane %v1131, 4
    %v1133 = vmax.f32 %v1131, %v1132
    %v1134 = vrot.slane %v1133, 2
    %v1135 = vmax.f32 %v1133, %v1134
    %v1136 = vrot.slane %v1135, 1
    %v1137 = vmax.f32 %v1135, %v1136
    %1138 = vset.pattern.permute.xlu0 1
    %1139 = vperm.xlu0 %1138, %v1037
    %v1140 = vpop.permute.xlu0 %1139
    %1142 = vset.pattern.permute.xlu0 1
    %1143 = vperm.xlu0 %1142, %v1038
    %v1144 = vpop.permute.xlu0 %1143
    %1146 = vset.pattern.permute.xlu0 1
    %1147 = vperm.xlu0 %1146, %v1039
    %v1148 = vpop.permute.xlu0 %1147
    %1150 = vset.pattern.permute.xlu0 1
    %1151 = vperm.xlu0 %1150, %v1040
    %v1152 = vpop.permute.xlu0 %1151
    %v1154 = vadd.f32 %v1140, %v932
    %v1155 = vadd.f32 %v1144, %v933
    %v1156 = vadd.f32 %v1148, %v934
    %v1157 = vadd.f32 %v1152, %v935
    %v1158 = vsel %vm513, %v1154, -inf
    %v1159 = vsel %vm513, %v1155, -inf
    %v1160 = vsel %vm513, %v1156, -inf
    %v1161 = vsel %vm513, %v1157, -inf
    %v1162 = vmax.f32 %v1158, %v1159
    %v1163 = vmax.f32 %v1160, %v1161
    %v1164 = vmax.f32 %v1162, %v1163
    %v1165 = vrot.slane %v1164, 4
    %v1166 = vmax.f32 %v1164, %v1165
    %v1167 = vrot.slane %v1166, 2
    %v1168 = vmax.f32 %v1166, %v1167
    %v1169 = vrot.slane %v1168, 1
    %v1170 = vmax.f32 %v1168, %v1169
    %vm1171 = vcmask 1040384
    %v1172 = vsel %vm1171, %v1137, %v1170
    %v1173 = vpack.c.bf16 %v1172, %v1172
    %v1174 = vadd.f32 %v1037, %v1087
    %v1175 = vadd.f32 %v1038, %v1090
    %v1176 = vadd.f32 %v1039, %v1095
    %v1177 = vadd.f32 %v1040, %v1098
    %vm1178 = vcmp.gt.f32.partialorder %v1174, 0.0
    %vm1179 = vcmp.gt.f32.partialorder %v1175, 0.0
    %vm1180 = vcmp.gt.f32.partialorder %v1176, 0.0
    %vm1181 = vcmp.gt.f32.partialorder %v1177, 0.0
    %v1182 = vmul.f32 %v1174, 0.01
    %v1183 = vmul.f32 %v1175, 0.01
    %v1184 = vmul.f32 %v1176, 0.01
    %v1185 = vmul.f32 %v1177, 0.01
    %v1186 = vsel %vm1178, %v1174, %v1182
    %v1187 = vsel %vm1179, %v1175, %v1183
    %v1188 = vsel %vm1180, %v1176, %v1184
    %v1189 = vsel %vm1181, %v1177, %v1185
    %v1191 = vsel %vm513, %v1173, 0
    %1193 = vmatprep.subr.bf16.mxu0 0
    %1194 = vmatpush1.bf16.xpose.msra.mxu0 %v1191
    %1195 = vmatprep.subr.bf16.mxu0 0
    %1196 = vmatpush1.bf16.xpose.msra.mxu0 0
    %1197 = vmatprep.subr.bf16.mxu0 0
    %1198 = vmatpush1.bf16.xpose.msra.mxu0 0
    %1199 = vmatprep.subr.bf16.mxu0 0
    %1200 = vmatpush1.bf16.xpose.msra.mxu0 0
    %1201 = vmatprep.subr.bf16.mxu0 0
    %1202 = vmatpush1.bf16.xpose.msra.mxu0 0
    %1203 = vmatprep.subr.bf16.mxu0 0
    %1204 = vmatpush1.bf16.xpose.msra.mxu0 0
    %1205 = vmatprep.subr.bf16.mxu0 0
    %1206 = vmatpush1.bf16.xpose.msra.mxu0 0
    %1207 = vmatprep.subr.bf16.mxu0 0
    %1208 = vmatpush1.bf16.xpose.msra.mxu0 0
    %1209 = vmatprep.subr.bf16.mxu0 0
    %1210 = vmatpush1.bf16.xpose.msra.mxu0 0
    %1211 = vmatprep.subr.bf16.mxu0 0
    %1212 = vmatpush1.bf16.xpose.msra.mxu0 0
    %1213 = vmatprep.subr.bf16.mxu0 0
    %1214 = vmatpush1.bf16.xpose.msra.mxu0 0
    %1215 = vmatprep.subr.bf16.mxu0 0
    %1216 = vmatpush1.bf16.xpose.msra.mxu0 0
    %1217 = vmatprep.subr.bf16.mxu0 0
    %1218 = vmatpush1.bf16.xpose.msra.mxu0 0
    %1219 = vmatprep.subr.bf16.mxu0 0
    %1220 = vmatpush1.bf16.xpose.msra.mxu0 0
    %1221 = vmatprep.subr.bf16.mxu0 0
    %1222 = vmatpush1.bf16.xpose.msra.mxu0 0
    %1223 = vmatprep.subr.bf16.mxu0 0
    %1224 = vmatpush1.bf16.xpose.msra.mxu0 0
    %1225 = vmatprep.mubr.bf16.mxu0 0
    %1226 = vmatmul.mubr.bf16.gmra.mrb[0].mxu0 %v1047
    %v1227 = vpop.f32.mrb[0].mxu0
    %v1228 = vadd.f32 %v1087, %v1227
    %v1229 = vpop.f32.mrb[0].mxu0
    %v1230 = vpop.f32.mrb[0].mxu0
    %v1231 = vadd.f32 %v1090, %v1230
    %v1232 = vpop.f32.mrb[0].mxu0
    %1233 = vmatprep.mubr.bf16.mxu0 0
    %1234 = vmatmul.mubr.bf16.gmra.mrb[0].mxu0 %v1050
    %v1235 = vpop.f32.mrb[0].mxu0
    %v1236 = vadd.f32 %v1095, %v1235
    %v1237 = vpop.f32.mrb[0].mxu0
    %v1238 = vpop.f32.mrb[0].mxu0
    %v1239 = vadd.f32 %v1098, %v1238
    %v1240 = vpop.f32.mrb[0].mxu0
    %1241 = vdwg.mxu0
    %vm1242 = vcmp.gt.f32.partialorder %v1228, 0.0
    %vm1243 = vcmp.gt.f32.partialorder %v1231, 0.0
    %vm1244 = vcmp.gt.f32.partialorder %v1236, 0.0
    %vm1245 = vcmp.gt.f32.partialorder %v1239, 0.0
    %v1246 = vmul.f32 %v1228, 0.01
    %v1247 = vmul.f32 %v1231, 0.01
    %v1248 = vmul.f32 %v1236, 0.01
    %v1249 = vmul.f32 %v1239, 0.01
    %v1250 = vsel %vm1242, %v1228, %v1246
    %v1251 = vsel %vm1243, %v1231, %v1247
    %v1252 = vsel %vm1244, %v1236, %v1248
    %v1253 = vsel %vm1245, %v1239, %v1249
    %v1254 = vsub.f32 %v1186, %v1250
    %v1255 = vsub.f32 %v1187, %v1251
    %v1256 = vsub.f32 %v1188, %v1252
    %v1257 = vsub.f32 %v1189, %v1253
    %v1258 = vmul.f32 %v1254, 1.442695
    %v1259 = vpow.pop %v1258
    %v1260 = vmul.f32 %v1255, 1.442695
    %v1261 = vpow.pop %v1260
    %v1262 = vmul.f32 %v1256, 1.442695
    %v1263 = vpow.pop %v1262
    %v1264 = vmul.f32 %v1257, 1.442695
    %v1265 = vpow.pop %v1264
    %v1266 = vld [vmem:[%s24] sm:$0x3]
    %v1268 = vsel %vm978, %v1259, 0
    %v1271 = vsel %vm978, %v1261, 0
    %v1274 = vsel %vm978, %v1263, 0
    %v1277 = vsel %vm978, %v1265, 0
    %vm1279 = vcmask 1041408
    %v1281 = vsel %vm1279, %v1266, 0
    %1283 = vmatprep.subr.mxu0 0.0
    %1284 = vmatpush1.msra.mxu0 %v1281
    %1285 = vmatprep.subr.mxu0 0.0
    %1286 = vmatpush1.msra.mxu0 0.0
    %1287 = vmatprep.subr.mxu0 0.0
    %1288 = vmatpush1.msra.mxu0 0.0
    %1289 = vmatprep.subr.mxu0 0.0
    %1290 = vmatpush1.msra.mxu0 0.0
    %1291 = vmatprep.subr.mxu0 0.0
    %1292 = vmatpush1.msra.mxu0 0.0
    %1293 = vmatprep.subr.mxu0 0.0
    %1294 = vmatpush1.msra.mxu0 0.0
    %1295 = vmatprep.subr.mxu0 0.0
    %1296 = vmatpush1.msra.mxu0 0.0
    %1297 = vmatprep.subr.mxu0 0.0
    %1298 = vmatpush1.msra.mxu0 0.0
    %1299 = vmatprep.subr.mxu0 0.0
    %1300 = vmatpush1.msra.mxu0 0.0
    %1301 = vmatprep.subr.mxu0 0.0
    %1302 = vmatpush1.msra.mxu0 0.0
    %1303 = vmatprep.subr.mxu0 0.0
    %1304 = vmatpush1.msra.mxu0 0.0
    %1305 = vmatprep.subr.mxu0 0.0
    %1306 = vmatpush1.msra.mxu0 0.0
    %1307 = vmatprep.subr.mxu0 0.0
    %1308 = vmatpush1.msra.mxu0 0.0
    %1309 = vmatprep.subr.mxu0 0.0
    %1310 = vmatpush1.msra.mxu0 0.0
    %1311 = vmatprep.subr.mxu0 0.0
    %1312 = vmatpush1.msra.mxu0 0.0
    %1313 = vmatprep.subr.mxu0 0.0
    %1314 = vmatpush1.msra.mxu0 0.0
    %1315 = vmatprep.subr.mxu0 0.0
    %1316 = vmatpush1.msra.mxu0 0.0
    %1317 = vmatprep.subr.mxu0 0.0
    %1318 = vmatpush1.msra.mxu0 0.0
    %1319 = vmatprep.subr.mxu0 0.0
    %1320 = vmatpush1.msra.mxu0 0.0
    %1321 = vmatprep.subr.mxu0 0.0
    %1322 = vmatpush1.msra.mxu0 0.0
    %1323 = vmatprep.subr.mxu0 0.0
    %1324 = vmatpush1.msra.mxu0 0.0
    %1325 = vmatprep.subr.mxu0 0.0
    %1326 = vmatpush1.msra.mxu0 0.0
    %1327 = vmatprep.subr.mxu0 0.0
    %1328 = vmatpush1.msra.mxu0 0.0
    %1329 = vmatprep.subr.mxu0 0.0
    %1330 = vmatpush1.msra.mxu0 0.0
    %1331 = vmatprep.subr.mxu0 0.0
    %1332 = vmatpush1.msra.mxu0 0.0
    %1333 = vmatprep.subr.mxu0 0.0
    %1334 = vmatpush1.msra.mxu0 0.0
    %1335 = vmatprep.subr.mxu0 0.0
    %1336 = vmatpush1.msra.mxu0 0.0
    %1337 = vmatprep.subr.mxu0 0.0
    %1338 = vmatpush1.msra.mxu0 0.0
    %1339 = vmatprep.subr.mxu0 0.0
    %1340 = vmatpush1.msra.mxu0 0.0
    %1341 = vmatprep.subr.mxu0 0.0
    %1342 = vmatpush1.msra.mxu0 0.0
    %1343 = vmatprep.subr.mxu0 0.0
    %1344 = vmatpush1.msra.mxu0 0.0
    %1345 = vmatprep.subr.mxu0 0.0
    %1346 = vmatpush1.msra.mxu0 0.0
    %1347 = vmatprep.mubr.f32.mxu0 0.0
    %1348 = vmatmul.mubr.f32.gmra.mrb[0].mxu0 %v1268
    %v1349 = vpop.f32.mrb[0].mxu0
    %v1350 = vadd.f32 0.0, %v1349
    %v1351 = vpop.f32.mrb[0].mxu0
    %1352 = vmatprep.mubr.f32.mxu0 0.0
    %1353 = vmatmul.mubr.f32.gmra.mrb[0].mxu0 %v1271
    %v1354 = vpop.f32.mrb[0].mxu0
    %v1355 = vadd.f32 0.0, %v1354
    %v1356 = vpop.f32.mrb[0].mxu0
    %1357 = vmatprep.mubr.f32.mxu0 0.0
    %1358 = vmatmul.mubr.f32.gmra.mrb[0].mxu0 %v1274
    %v1359 = vpop.f32.mrb[0].mxu0
    %v1360 = vadd.f32 0.0, %v1359
    %v1361 = vpop.f32.mrb[0].mxu0
    %1362 = vmatprep.mubr.f32.mxu0 0.0
    %1363 = vmatmul.mubr.f32.gmra.mrb[0].mxu0 %v1277
    %v1364 = vpop.f32.mrb[0].mxu0
    %v1365 = vadd.f32 0.0, %v1364
    %v1366 = vpop.f32.mrb[0].mxu0
    %1367 = vdwg.mxu0
    %1372 = vrot.lane.b32.xlu0 %v1023, 126
    %v1373 = vpop.permute.xlu0 %1372
    %1374 = vrot.lane.b32.xlu0 %v1026, 126
    %v1375 = vpop.permute.xlu0 %1374
    %1376 = vrot.lane.b32.xlu0 %v1031, 126
    %v1377 = vpop.permute.xlu0 %1376
    %1378 = vrot.lane.b32.xlu0 %v1034, 126
    %v1379 = vpop.permute.xlu0 %1378
    %v1384 = vmul.f32 %v1350, %v1373
    %v1385 = vmul.f32 %v1355, %v1375
    %v1386 = vmul.f32 %v1360, %v1377
    %v1387 = vmul.f32 %v1365, %v1379
    %1392 = vrot.lane.b32.xlu0 %v1384, 2
    %v1393 = vpop.permute.xlu0 %1392
    %1394 = vrot.lane.b32.xlu0 %v1385, 2
    %v1395 = vpop.permute.xlu0 %1394
    %1396 = vrot.lane.b32.xlu0 %v1386, 2
    %v1397 = vpop.permute.xlu0 %1396
    %1398 = vrot.lane.b32.xlu0 %v1387, 2
    %v1399 = vpop.permute.xlu0 %1398
    %v1404 = vsel %vm978, %v1259, %v1393
    %v1405 = vsel %vm978, %v1261, %v1395
    %v1406 = vsel %vm978, %v1263, %v1397
    %v1407 = vsel %vm978, %v1265, %v1399
    %v1408 = vpack.c.bf16 %v1405, %v1404
    %v1409 = vpack.c.bf16 %v1407, %v1406
    %v1411 = vsel %vm181, %v948, 0
    %1413 = vmatprep.subr.bf16.mxu0 0
    %1414 = vmatpush1.bf16.msra.mxu0 %v1408
    %1415 = vmatprep.subr.bf16.mxu0 0
    %1416 = vmatpush1.bf16.msra.mxu0 %v1409
    %1417 = vmatprep.subr.bf16.mxu0 0
    %1418 = vmatpush1.bf16.msra.mxu0 0
    %1419 = vmatprep.subr.bf16.mxu0 0
    %1420 = vmatpush1.bf16.msra.mxu0 0
    %1421 = vmatprep.subr.bf16.mxu0 0
    %1422 = vmatpush1.bf16.msra.mxu0 0
    %1423 = vmatprep.subr.bf16.mxu0 0
    %1424 = vmatpush1.bf16.msra.mxu0 0
    %1425 = vmatprep.subr.bf16.mxu0 0
    %1426 = vmatpush1.bf16.msra.mxu0 0
    %1427 = vmatprep.subr.bf16.mxu0 0
    %1428 = vmatpush1.bf16.msra.mxu0 0
    %1429 = vmatprep.subr.bf16.mxu0 0
    %1430 = vmatpush1.bf16.msra.mxu0 0
    %1431 = vmatprep.subr.bf16.mxu0 0
    %1432 = vmatpush1.bf16.msra.mxu0 0
    %1433 = vmatprep.subr.bf16.mxu0 0
    %1434 = vmatpush1.bf16.msra.mxu0 0
    %1435 = vmatprep.subr.bf16.mxu0 0
    %1436 = vmatpush1.bf16.msra.mxu0 0
    %1437 = vmatprep.subr.bf16.mxu0 0
    %1438 = vmatpush1.bf16.msra.mxu0 0
    %1439 = vmatprep.subr.bf16.mxu0 0
    %1440 = vmatpush1.bf16.msra.mxu0 0
    %1441 = vmatprep.subr.bf16.mxu0 0
    %1442 = vmatpush1.bf16.msra.mxu0 0
    %1443 = vmatprep.subr.bf16.mxu0 0
    %1444 = vmatpush1.bf16.msra.mxu0 0
    %1445 = vmatprep.mubr.bf16.mxu0 0
    %1446 = vmatmul.mubr.bf16.gmra.mrb[0].mxu0 %v1411
    %v1447 = vpop.f32.mrb[0].mxu0
    %v1448 = vadd.f32 0.0, %v1447
    %v1449 = vpop.f32.mrb[0].mxu0
    %v1450 = vpop.f32.mrb[0].mxu0
    %v1451 = vadd.f32 0.0, %v1450
    %v1452 = vpop.f32.mrb[0].mxu0
    %1453 = vdwg.mxu0
    %vm1454 = vcmp.gt.f32.partialorder %v1448, 0.0
    %vm1455 = vcmp.gt.f32.partialorder %v1451, 0.0
    %v1456 = vsel %vm1454, %v1448, 1.0
    %v1457 = vsel %vm1455, %v1451, 1.0
    %v1458 = vrcp.pop %v1456
    %v1459 = vmul.f32 1.0, %v1458
    %v1460 = vrcp.pop %v1457
    %v1461 = vmul.f32 1.0, %v1460
    %v1463 = vsel %vm978, %v1459, 0
    %v1466 = vsel %vm978, %v1461, 0
    %1468 = vmatprep.subr.mxu0 0.0
    %1469 = vmatpush1.msra.mxu0 %v1281
    %1470 = vmatprep.subr.mxu0 0.0
    %1471 = vmatpush1.msra.mxu0 0.0
    %1472 = vmatprep.subr.mxu0 0.0
    %1473 = vmatpush1.msra.mxu0 0.0
    %1474 = vmatprep.subr.mxu0 0.0
    %1475 = vmatpush1.msra.mxu0 0.0
    %1476 = vmatprep.subr.mxu0 0.0
    %1477 = vmatpush1.msra.mxu0 0.0
    %1478 = vmatprep.subr.mxu0 0.0
    %1479 = vmatpush1.msra.mxu0 0.0
    %1480 = vmatprep.subr.mxu0 0.0
    %1481 = vmatpush1.msra.mxu0 0.0
    %1482 = vmatprep.subr.mxu0 0.0
    %1483 = vmatpush1.msra.mxu0 0.0
    %1484 = vmatprep.subr.mxu0 0.0
    %1485 = vmatpush1.msra.mxu0 0.0
    %1486 = vmatprep.subr.mxu0 0.0
    %1487 = vmatpush1.msra.mxu0 0.0
    %1488 = vmatprep.subr.mxu0 0.0
    %1489 = vmatpush1.msra.mxu0 0.0
    %1490 = vmatprep.subr.mxu0 0.0
    %1491 = vmatpush1.msra.mxu0 0.0
    %1492 = vmatprep.subr.mxu0 0.0
    %1493 = vmatpush1.msra.mxu0 0.0
    %1494 = vmatprep.subr.mxu0 0.0
    %1495 = vmatpush1.msra.mxu0 0.0
    %1496 = vmatprep.subr.mxu0 0.0
    %1497 = vmatpush1.msra.mxu0 0.0
    %1498 = vmatprep.subr.mxu0 0.0
    %1499 = vmatpush1.msra.mxu0 0.0
    %1500 = vmatprep.subr.mxu0 0.0
    %1501 = vmatpush1.msra.mxu0 0.0
    %1502 = vmatprep.subr.mxu0 0.0
    %1503 = vmatpush1.msra.mxu0 0.0
    %1504 = vmatprep.subr.mxu0 0.0
    %1505 = vmatpush1.msra.mxu0 0.0
    %1506 = vmatprep.subr.mxu0 0.0
    %1507 = vmatpush1.msra.mxu0 0.0
    %1508 = vmatprep.subr.mxu0 0.0
    %1509 = vmatpush1.msra.mxu0 0.0
    %1510 = vmatprep.subr.mxu0 0.0
    %1511 = vmatpush1.msra.mxu0 0.0
    %1512 = vmatprep.subr.mxu0 0.0
    %1513 = vmatpush1.msra.mxu0 0.0
    %1514 = vmatprep.subr.mxu0 0.0
    %1515 = vmatpush1.msra.mxu0 0.0
    %1516 = vmatprep.subr.mxu0 0.0
    %1517 = vmatpush1.msra.mxu0 0.0
    %1518 = vmatprep.subr.mxu0 0.0
    %1519 = vmatpush1.msra.mxu0 0.0
    %1520 = vmatprep.subr.mxu0 0.0
    %1521 = vmatpush1.msra.mxu0 0.0
    %1522 = vmatprep.subr.mxu0 0.0
    %1523 = vmatpush1.msra.mxu0 0.0
    %1524 = vmatprep.subr.mxu0 0.0
    %1525 = vmatpush1.msra.mxu0 0.0
    %1526 = vmatprep.subr.mxu0 0.0
    %1527 = vmatpush1.msra.mxu0 0.0
    %1528 = vmatprep.subr.mxu0 0.0
    %1529 = vmatpush1.msra.mxu0 0.0
    %1530 = vmatprep.subr.mxu0 0.0
    %1531 = vmatpush1.msra.mxu0 0.0
    %1532 = vmatprep.mubr.f32.mxu0 0.0
    %1533 = vmatmul.mubr.f32.gmra.mrb[0].mxu0 %v1463
    %v1534 = vpop.f32.mrb[0].mxu0
    %v1535 = vadd.f32 0.0, %v1534
    %v1536 = vpop.f32.mrb[0].mxu0
    %1537 = vmatprep.mubr.f32.mxu0 0.0
    %1538 = vmatmul.mubr.f32.gmra.mrb[0].mxu0 %v1466
    %v1539 = vpop.f32.mrb[0].mxu0
    %v1540 = vadd.f32 0.0, %v1539
    %v1541 = vpop.f32.mrb[0].mxu0
    %1542 = vdwg.mxu0
    %1545 = vrot.lane.b32.xlu0 %v1535, 2
    %v1546 = vpop.permute.xlu0 %1545
    %1547 = vrot.lane.b32.xlu0 %v1540, 2
    %v1548 = vpop.permute.xlu0 %1547
    %v1551 = vmul.f32 %v1448, %v1546
    %v1552 = vmul.f32 %v1451, %v1548
    %1555 = vrot.lane.b32.xlu0 %v1551, 126
    %v1556 = vpop.permute.xlu0 %1555
    %1557 = vrot.lane.b32.xlu0 %v1552, 126
    %v1558 = vpop.permute.xlu0 %1557
    %v1561 = vadd.f32 %v602, %v1556
    %v1562 = vadd.f32 %v603, %v1558
    %vm1563 = vcmp.gt.f32.partialorder %v1561, 0.0
    %vm1564 = vcmp.gt.f32.partialorder %v1562, 0.0
    %v1565 = vmul.f32 %v1561, 0.01
    %v1566 = vmul.f32 %v1562, 0.01
    %v1567 = vsel %vm1563, %v1561, %v1565
    %v1568 = vsel %vm1564, %v1562, %v1566
    %v1569 = vld [vmem:[%s22] sm:$0xff]
    %v1570 = vld [vmem:[%s22 + $0x8] sm:$0xff]
    %v1571 = vld [vmem:[%s22 + $0x10] sm:$0xff]
    %v1572 = vld [vmem:[%s22 + $0x18] sm:$0xff]
    %v1573 = vld [vmem:[%s22 + $0x20] sm:$0xff]
    %v1574 = vld [vmem:[%s22 + $0x28] sm:$0xff]
    %v1575 = vld [vmem:[%s22 + $0x30] sm:$0xff]
    %v1576 = vld [vmem:[%s22 + $0x38] sm:$0xff]
    %v1578 = vsel %vm612, %v1567, 0
    %v1581 = vsel %vm612, %v1568, 0
    %1583 = vmatprep.subr.mxu0 0.0
    %1584 = vmatpush1.msra.mxu0 %v1569
    %1585 = vmatprep.subr.mxu0 0.0
    %1586 = vmatpush1.msra.mxu0 %v1570
    %1587 = vmatprep.subr.mxu0 0.0
    %1588 = vmatpush1.msra.mxu0 %v1571
    %1589 = vmatprep.subr.mxu0 0.0
    %1590 = vmatpush1.msra.mxu0 %v1572
    %1591 = vmatprep.subr.mxu0 0.0
    %1592 = vmatpush1.msra.mxu0 %v1573
    %1593 = vmatprep.subr.mxu0 0.0
    %1594 = vmatpush1.msra.mxu0 %v1574
    %1595 = vmatprep.subr.mxu0 0.0
    %1596 = vmatpush1.msra.mxu0 %v1575
    %1597 = vmatprep.subr.mxu0 0.0
    %1598 = vmatpush1.msra.mxu0 %v1576
    %1599 = vmatprep.subr.mxu0 0.0
    %1600 = vmatpush1.msra.mxu0 0.0
    %1601 = vmatprep.subr.mxu0 0.0
    %1602 = vmatpush1.msra.mxu0 0.0
    %1603 = vmatprep.subr.mxu0 0.0
    %1604 = vmatpush1.msra.mxu0 0.0
    %1605 = vmatprep.subr.mxu0 0.0
    %1606 = vmatpush1.msra.mxu0 0.0
    %1607 = vmatprep.subr.mxu0 0.0
    %1608 = vmatpush1.msra.mxu0 0.0
    %1609 = vmatprep.subr.mxu0 0.0
    %1610 = vmatpush1.msra.mxu0 0.0
    %1611 = vmatprep.subr.mxu0 0.0
    %1612 = vmatpush1.msra.mxu0 0.0
    %1613 = vmatprep.subr.mxu0 0.0
    %1614 = vmatpush1.msra.mxu0 0.0
    %1615 = vmatprep.subr.mxu0 0.0
    %1616 = vmatpush1.msra.mxu0 0.0
    %1617 = vmatprep.subr.mxu0 0.0
    %1618 = vmatpush1.msra.mxu0 0.0
    %1619 = vmatprep.subr.mxu0 0.0
    %1620 = vmatpush1.msra.mxu0 0.0
    %1621 = vmatprep.subr.mxu0 0.0
    %1622 = vmatpush1.msra.mxu0 0.0
    %1623 = vmatprep.subr.mxu0 0.0
    %1624 = vmatpush1.msra.mxu0 0.0
    %1625 = vmatprep.subr.mxu0 0.0
    %1626 = vmatpush1.msra.mxu0 0.0
    %1627 = vmatprep.subr.mxu0 0.0
    %1628 = vmatpush1.msra.mxu0 0.0
    %1629 = vmatprep.subr.mxu0 0.0
    %1630 = vmatpush1.msra.mxu0 0.0
    %1631 = vmatprep.subr.mxu0 0.0
    %1632 = vmatpush1.msra.mxu0 0.0
    %1633 = vmatprep.subr.mxu0 0.0
    %1634 = vmatpush1.msra.mxu0 0.0
    %1635 = vmatprep.subr.mxu0 0.0
    %1636 = vmatpush1.msra.mxu0 0.0
    %1637 = vmatprep.subr.mxu0 0.0
    %1638 = vmatpush1.msra.mxu0 0.0
    %1639 = vmatprep.subr.mxu0 0.0
    %1640 = vmatpush1.msra.mxu0 0.0
    %1641 = vmatprep.subr.mxu0 0.0
    %1642 = vmatpush1.msra.mxu0 0.0
    %1643 = vmatprep.subr.mxu0 0.0
    %1644 = vmatpush1.msra.mxu0 0.0
    %1645 = vmatprep.subr.mxu0 0.0
    %1646 = vmatpush1.msra.mxu0 0.0
    %1647 = vmatprep.mubr.f32.mxu0 0.0
    %1648 = vmatmul.mubr.f32.gmra.mrb[0].mxu0 %v1578
    %v1649 = vpop.f32.mrb[0].mxu0
    %v1650 = vadd.f32 0.0, %v1649
    %v1651 = vpop.f32.mrb[0].mxu0
    %1652 = vmatprep.mubr.f32.mxu0 0.0
    %1653 = vmatmul.mubr.f32.gmra.mrb[0].mxu0 %v1581
    %v1654 = vpop.f32.mrb[0].mxu0
    %v1655 = vadd.f32 0.0, %v1654
    %v1656 = vpop.f32.mrb[0].mxu0
    %1657 = vdwg.mxu0
    %v1658 = vld [vmem:[%s23] sm:$0xff]
    %v1659 = vld [vmem:[%s23 + $0x8] sm:$0xff]
    %v1660 = vld [vmem:[%s23 + $0x10] sm:$0xff]
    %v1661 = vld [vmem:[%s23 + $0x18] sm:$0xff]
    %v1662 = vld [vmem:[%s23 + $0x20] sm:$0xff]
    %v1663 = vld [vmem:[%s23 + $0x28] sm:$0xff]
    %v1664 = vld [vmem:[%s23 + $0x30] sm:$0xff]
    %v1665 = vld [vmem:[%s23 + $0x38] sm:$0xff]
    %1666 = vmatprep.subr.mxu0 0.0
    %1667 = vmatpush1.msra.mxu0 %v1658
    %1668 = vmatprep.subr.mxu0 0.0
    %1669 = vmatpush1.msra.mxu0 %v1659
    %1670 = vmatprep.subr.mxu0 0.0
    %1671 = vmatpush1.msra.mxu0 %v1660
    %1672 = vmatprep.subr.mxu0 0.0
    %1673 = vmatpush1.msra.mxu0 %v1661
    %1674 = vmatprep.subr.mxu0 0.0
    %1675 = vmatpush1.msra.mxu0 %v1662
    %1676 = vmatprep.subr.mxu0 0.0
    %1677 = vmatpush1.msra.mxu0 %v1663
    %1678 = vmatprep.subr.mxu0 0.0
    %1679 = vmatpush1.msra.mxu0 %v1664
    %1680 = vmatprep.subr.mxu0 0.0
    %1681 = vmatpush1.msra.mxu0 %v1665
    %1682 = vmatprep.subr.mxu0 0.0
    %1683 = vmatpush1.msra.mxu0 0.0
    %1684 = vmatprep.subr.mxu0 0.0
    %1685 = vmatpush1.msra.mxu0 0.0
    %1686 = vmatprep.subr.mxu0 0.0
    %1687 = vmatpush1.msra.mxu0 0.0
    %1688 = vmatprep.subr.mxu0 0.0
    %1689 = vmatpush1.msra.mxu0 0.0
    %1690 = vmatprep.subr.mxu0 0.0
    %1691 = vmatpush1.msra.mxu0 0.0
    %1692 = vmatprep.subr.mxu0 0.0
    %1693 = vmatpush1.msra.mxu0 0.0
    %1694 = vmatprep.subr.mxu0 0.0
    %1695 = vmatpush1.msra.mxu0 0.0
    %1696 = vmatprep.subr.mxu0 0.0
    %1697 = vmatpush1.msra.mxu0 0.0
    %1698 = vmatprep.subr.mxu0 0.0
    %1699 = vmatpush1.msra.mxu0 0.0
    %1700 = vmatprep.subr.mxu0 0.0
    %1701 = vmatpush1.msra.mxu0 0.0
    %1702 = vmatprep.subr.mxu0 0.0
    %1703 = vmatpush1.msra.mxu0 0.0
    %1704 = vmatprep.subr.mxu0 0.0
    %1705 = vmatpush1.msra.mxu0 0.0
    %1706 = vmatprep.subr.mxu0 0.0
    %1707 = vmatpush1.msra.mxu0 0.0
    %1708 = vmatprep.subr.mxu0 0.0
    %1709 = vmatpush1.msra.mxu0 0.0
    %1710 = vmatprep.subr.mxu0 0.0
    %1711 = vmatpush1.msra.mxu0 0.0
    %1712 = vmatprep.subr.mxu0 0.0
    %1713 = vmatpush1.msra.mxu0 0.0
    %1714 = vmatprep.subr.mxu0 0.0
    %1715 = vmatpush1.msra.mxu0 0.0
    %1716 = vmatprep.subr.mxu0 0.0
    %1717 = vmatpush1.msra.mxu0 0.0
    %1718 = vmatprep.subr.mxu0 0.0
    %1719 = vmatpush1.msra.mxu0 0.0
    %1720 = vmatprep.subr.mxu0 0.0
    %1721 = vmatpush1.msra.mxu0 0.0
    %1722 = vmatprep.subr.mxu0 0.0
    %1723 = vmatpush1.msra.mxu0 0.0
    %1724 = vmatprep.subr.mxu0 0.0
    %1725 = vmatpush1.msra.mxu0 0.0
    %1726 = vmatprep.subr.mxu0 0.0
    %1727 = vmatpush1.msra.mxu0 0.0
    %1728 = vmatprep.subr.mxu0 0.0
    %1729 = vmatpush1.msra.mxu0 0.0
    %1730 = vmatprep.mubr.f32.mxu0 0.0
    %1731 = vmatmul.mubr.f32.gmra.mrb[0].mxu0 %v1578
    %v1732 = vpop.f32.mrb[0].mxu0
    %v1733 = vadd.f32 0.0, %v1732
    %v1734 = vpop.f32.mrb[0].mxu0
    %1735 = vmatprep.mubr.f32.mxu0 0.0
    %1736 = vmatmul.mubr.f32.gmra.mrb[0].mxu0 %v1581
    %v1737 = vpop.f32.mrb[0].mxu0
    %v1738 = vadd.f32 0.0, %v1737
    %v1739 = vpop.f32.mrb[0].mxu0
    %1740 = vdwg.mxu0
    %v1741 = vsel %vm957, 0.0, -1e+30
    %v1742 = vsel %vm958, 0.0, -1e+30
    %1744 = vset.pattern.permute.xlu0 0
    %1745 = vperm.xlu0 %1744, %v1650
    %v1746 = vpop.permute.xlu0 %1745
    %1749 = vset.pattern.permute.xlu0 0
    %1750 = vperm.xlu0 %1749, %v1655
    %v1751 = vpop.permute.xlu0 %1750
    %v1753 = vadd.f32 %v1746, %v1741
    %v1754 = vadd.f32 %v1751, %v1742
    %v1755 = vsel %vm978, %v1753, -inf
    %v1756 = vsel %vm978, %v1754, -inf
    %v1757 = vmax.f32 %v1755, %v1756
    %v1758 = vrot.slane %v1757, 4
    %v1759 = vmax.f32 %v1757, %v1758
    %v1760 = vrot.slane %v1759, 2
    %v1761 = vmax.f32 %v1759, %v1760
    %v1762 = vrot.slane %v1761, 1
    %v1763 = vmax.f32 %v1761, %v1762
    %1764 = vset.pattern.permute.xlu0 1
    %1765 = vperm.xlu0 %1764, %v1650
    %v1766 = vpop.permute.xlu0 %1765
    %1768 = vset.pattern.permute.xlu0 1
    %1769 = vperm.xlu0 %1768, %v1655
    %v1770 = vpop.permute.xlu0 %1769
    %v1772 = vadd.f32 %v1766, %v1741
    %v1773 = vadd.f32 %v1770, %v1742
    %v1774 = vsel %vm978, %v1772, -inf
    %v1775 = vsel %vm978, %v1773, -inf
    %v1776 = vmax.f32 %v1774, %v1775
    %v1777 = vrot.slane %v1776, 4
    %v1778 = vmax.f32 %v1776, %v1777
    %v1779 = vrot.slane %v1778, 2
    %v1780 = vmax.f32 %v1778, %v1779
    %v1781 = vrot.slane %v1780, 1
    %v1782 = vmax.f32 %v1780, %v1781
    %v1783 = vsel %vm1171, %v1763, %v1782
    %v1784 = vpack.c.bf16 %v1783, %v1783
    %v1786 = vsel %vm978, %v961, 0
    %v1789 = vsel %vm978, %v1784, 0
    %1791 = vmatprep.subr.bf16.mxu0 0
    %1792 = vmatpush1.bf16.xpose.msra.mxu0 %v1789
    %1793 = vmatprep.subr.bf16.mxu0 0
    %1794 = vmatpush1.bf16.xpose.msra.mxu0 0
    %1795 = vmatprep.subr.bf16.mxu0 0
    %1796 = vmatpush1.bf16.xpose.msra.mxu0 0
    %1797 = vmatprep.subr.bf16.mxu0 0
    %1798 = vmatpush1.bf16.xpose.msra.mxu0 0
    %1799 = vmatprep.subr.bf16.mxu0 0
    %1800 = vmatpush1.bf16.xpose.msra.mxu0 0
    %1801 = vmatprep.subr.bf16.mxu0 0
    %1802 = vmatpush1.bf16.xpose.msra.mxu0 0
    %1803 = vmatprep.subr.bf16.mxu0 0
    %1804 = vmatpush1.bf16.xpose.msra.mxu0 0
    %1805 = vmatprep.subr.bf16.mxu0 0
    %1806 = vmatpush1.bf16.xpose.msra.mxu0 0
    %1807 = vmatprep.subr.bf16.mxu0 0
    %1808 = vmatpush1.bf16.xpose.msra.mxu0 0
    %1809 = vmatprep.subr.bf16.mxu0 0
    %1810 = vmatpush1.bf16.xpose.msra.mxu0 0
    %1811 = vmatprep.subr.bf16.mxu0 0
    %1812 = vmatpush1.bf16.xpose.msra.mxu0 0
    %1813 = vmatprep.subr.bf16.mxu0 0
    %1814 = vmatpush1.bf16.xpose.msra.mxu0 0
    %1815 = vmatprep.subr.bf16.mxu0 0
    %1816 = vmatpush1.bf16.xpose.msra.mxu0 0
    %1817 = vmatprep.subr.bf16.mxu0 0
    %1818 = vmatpush1.bf16.xpose.msra.mxu0 0
    %1819 = vmatprep.subr.bf16.mxu0 0
    %1820 = vmatpush1.bf16.xpose.msra.mxu0 0
    %1821 = vmatprep.subr.bf16.mxu0 0
    %1822 = vmatpush1.bf16.xpose.msra.mxu0 0
    %1823 = vmatprep.mubr.bf16.mxu0 0
    %1824 = vmatmul.mubr.bf16.gmra.mrb[0].mxu0 %v1786
    %v1825 = vpop.f32.mrb[0].mxu0
    %v1826 = vadd.f32 0.0, %v1825
    %v1827 = vpop.f32.mrb[0].mxu0
    %v1828 = vpop.f32.mrb[0].mxu0
    %v1829 = vadd.f32 0.0, %v1828
    %v1830 = vpop.f32.mrb[0].mxu0
    %1831 = vdwg.mxu0
    %v1832 = vsub.f32 %v1650, %v1826
    %v1833 = vsub.f32 %v1655, %v1829
    %v1834 = vmul.f32 %v1832, 1.442695
    %v1835 = vpow.pop %v1834
    %v1836 = vmul.f32 %v1833, 1.442695
    %v1837 = vpow.pop %v1836
    %v1839 = vsel %vm978, %v1835, 0
    %v1842 = vsel %vm978, %v1837, 0
    %1844 = vmatprep.subr.mxu0 0.0
    %1845 = vmatpush1.msra.mxu0 %v1281
    %1846 = vmatprep.subr.mxu0 0.0
    %1847 = vmatpush1.msra.mxu0 0.0
    %1848 = vmatprep.subr.mxu0 0.0
    %1849 = vmatpush1.msra.mxu0 0.0
    %1850 = vmatprep.subr.mxu0 0.0
    %1851 = vmatpush1.msra.mxu0 0.0
    %1852 = vmatprep.subr.mxu0 0.0
    %1853 = vmatpush1.msra.mxu0 0.0
    %1854 = vmatprep.subr.mxu0 0.0
    %1855 = vmatpush1.msra.mxu0 0.0
    %1856 = vmatprep.subr.mxu0 0.0
    %1857 = vmatpush1.msra.mxu0 0.0
    %1858 = vmatprep.subr.mxu0 0.0
    %1859 = vmatpush1.msra.mxu0 0.0
    %1860 = vmatprep.subr.mxu0 0.0
    %1861 = vmatpush1.msra.mxu0 0.0
    %1862 = vmatprep.subr.mxu0 0.0
    %1863 = vmatpush1.msra.mxu0 0.0
    %1864 = vmatprep.subr.mxu0 0.0
    %1865 = vmatpush1.msra.mxu0 0.0
    %1866 = vmatprep.subr.mxu0 0.0
    %1867 = vmatpush1.msra.mxu0 0.0
    %1868 = vmatprep.subr.mxu0 0.0
    %1869 = vmatpush1.msra.mxu0 0.0
    %1870 = vmatprep.subr.mxu0 0.0
    %1871 = vmatpush1.msra.mxu0 0.0
    %1872 = vmatprep.subr.mxu0 0.0
    %1873 = vmatpush1.msra.mxu0 0.0
    %1874 = vmatprep.subr.mxu0 0.0
    %1875 = vmatpush1.msra.mxu0 0.0
    %1876 = vmatprep.subr.mxu0 0.0
    %1877 = vmatpush1.msra.mxu0 0.0
    %1878 = vmatprep.subr.mxu0 0.0
    %1879 = vmatpush1.msra.mxu0 0.0
    %1880 = vmatprep.subr.mxu0 0.0
    %1881 = vmatpush1.msra.mxu0 0.0
    %1882 = vmatprep.subr.mxu0 0.0
    %1883 = vmatpush1.msra.mxu0 0.0
    %1884 = vmatprep.subr.mxu0 0.0
    %1885 = vmatpush1.msra.mxu0 0.0
    %1886 = vmatprep.subr.mxu0 0.0
    %1887 = vmatpush1.msra.mxu0 0.0
    %1888 = vmatprep.subr.mxu0 0.0
    %1889 = vmatpush1.msra.mxu0 0.0
    %1890 = vmatprep.subr.mxu0 0.0
    %1891 = vmatpush1.msra.mxu0 0.0
    %1892 = vmatprep.subr.mxu0 0.0
    %1893 = vmatpush1.msra.mxu0 0.0
    %1894 = vmatprep.subr.mxu0 0.0
    %1895 = vmatpush1.msra.mxu0 0.0
    %1896 = vmatprep.subr.mxu0 0.0
    %1897 = vmatpush1.msra.mxu0 0.0
    %1898 = vmatprep.subr.mxu0 0.0
    %1899 = vmatpush1.msra.mxu0 0.0
    %1900 = vmatprep.subr.mxu0 0.0
    %1901 = vmatpush1.msra.mxu0 0.0
    %1902 = vmatprep.subr.mxu0 0.0
    %1903 = vmatpush1.msra.mxu0 0.0
    %1904 = vmatprep.subr.mxu0 0.0
    %1905 = vmatpush1.msra.mxu0 0.0
    %1906 = vmatprep.subr.mxu0 0.0
    %1907 = vmatpush1.msra.mxu0 0.0
    %1908 = vmatprep.mubr.f32.mxu0 0.0
    %1909 = vmatmul.mubr.f32.gmra.mrb[0].mxu0 %v1839
    %v1910 = vpop.f32.mrb[0].mxu0
    %v1911 = vadd.f32 0.0, %v1910
    %v1912 = vpop.f32.mrb[0].mxu0
    %1913 = vmatprep.mubr.f32.mxu0 0.0
    %1914 = vmatmul.mubr.f32.gmra.mrb[0].mxu0 %v1842
    %v1915 = vpop.f32.mrb[0].mxu0
    %v1916 = vadd.f32 0.0, %v1915
    %v1917 = vpop.f32.mrb[0].mxu0
    %1918 = vdwg.mxu0
    %v1919 = vmul.f32 %v1911, %v1733
    %v1920 = vmul.f32 %v1916, %v1738
    %1923 = vrot.lane.b32.xlu0 %v1919, 2
    %v1924 = vpop.permute.xlu0 %1923
    %1925 = vrot.lane.b32.xlu0 %v1920, 2
    %v1926 = vpop.permute.xlu0 %1925
    %v1929 = vsel %vm978, %v1835, %v1924
    %v1930 = vsel %vm978, %v1837, %v1926
    %v1931 = vpack.c.bf16 %v1930, %v1929
    %v1933 = vsel %vm513, %v969, 0
    %1935 = vmatprep.subr.bf16.mxu0 0
    %1936 = vmatpush1.bf16.msra.mxu0 %v1931
    %1937 = vmatprep.subr.bf16.mxu0 0
    %1938 = vmatpush1.bf16.msra.mxu0 0
    %1939 = vmatprep.subr.bf16.mxu0 0
    %1940 = vmatpush1.bf16.msra.mxu0 0
    %1941 = vmatprep.subr.bf16.mxu0 0
    %1942 = vmatpush1.bf16.msra.mxu0 0
    %1943 = vmatprep.subr.bf16.mxu0 0
    %1944 = vmatpush1.bf16.msra.mxu0 0
    %1945 = vmatprep.subr.bf16.mxu0 0
    %1946 = vmatpush1.bf16.msra.mxu0 0
    %1947 = vmatprep.subr.bf16.mxu0 0
    %1948 = vmatpush1.bf16.msra.mxu0 0
    %1949 = vmatprep.subr.bf16.mxu0 0
    %1950 = vmatpush1.bf16.msra.mxu0 0
    %1951 = vmatprep.subr.bf16.mxu0 0
    %1952 = vmatpush1.bf16.msra.mxu0 0
    %1953 = vmatprep.subr.bf16.mxu0 0
    %1954 = vmatpush1.bf16.msra.mxu0 0
    %1955 = vmatprep.subr.bf16.mxu0 0
    %1956 = vmatpush1.bf16.msra.mxu0 0
    %1957 = vmatprep.subr.bf16.mxu0 0
    %1958 = vmatpush1.bf16.msra.mxu0 0
    %1959 = vmatprep.subr.bf16.mxu0 0
    %1960 = vmatpush1.bf16.msra.mxu0 0
    %1961 = vmatprep.subr.bf16.mxu0 0
    %1962 = vmatpush1.bf16.msra.mxu0 0
    %1963 = vmatprep.subr.bf16.mxu0 0
    %1964 = vmatpush1.bf16.msra.mxu0 0
    %1965 = vmatprep.subr.bf16.mxu0 0
    %1966 = vmatpush1.bf16.msra.mxu0 0
    %1967 = vmatprep.mubr.bf16.mxu0 0
    %1968 = vmatmul.mubr.bf16.gmra.mrb[0].mxu0 %v1933
    %v1969 = vpop.f32.mrb[0].mxu0
    %v1970 = vadd.f32 0.0, %v1969
    %v1971 = vpop.f32.mrb[0].mxu0
    %v1972 = vpop.f32.mrb[0].mxu0
    %v1973 = vpop.f32.mrb[0].mxu0
    %1974 = vdwg.mxu0
    %vm1975 = vcmp.gt.f32.partialorder %v1970, 0.0
    %v1976 = vsel %vm1975, %v1970, 1.0
    %v1977 = vrcp.pop %v1976
    %v1978 = vmul.f32 1.0, %v1977
    %v1980 = vsel %vm978, %v1978, 0
    %1982 = vmatprep.subr.mxu0 0.0
    %1983 = vmatpush1.msra.mxu0 %v1281
    %1984 = vmatprep.subr.mxu0 0.0
    %1985 = vmatpush1.msra.mxu0 0.0
    %1986 = vmatprep.subr.mxu0 0.0
    %1987 = vmatpush1.msra.mxu0 0.0
    %1988 = vmatprep.subr.mxu0 0.0
    %1989 = vmatpush1.msra.mxu0 0.0
    %1990 = vmatprep.subr.mxu0 0.0
    %1991 = vmatpush1.msra.mxu0 0.0
    %1992 = vmatprep.subr.mxu0 0.0
    %1993 = vmatpush1.msra.mxu0 0.0
    %1994 = vmatprep.subr.mxu0 0.0
    %1995 = vmatpush1.msra.mxu0 0.0
    %1996 = vmatprep.subr.mxu0 0.0
    %1997 = vmatpush1.msra.mxu0 0.0
    %1998 = vmatprep.subr.mxu0 0.0
    %1999 = vmatpush1.msra.mxu0 0.0
    %2000 = vmatprep.subr.mxu0 0.0
    %2001 = vmatpush1.msra.mxu0 0.0
    %2002 = vmatprep.subr.mxu0 0.0
    %2003 = vmatpush1.msra.mxu0 0.0
    %2004 = vmatprep.subr.mxu0 0.0
    %2005 = vmatpush1.msra.mxu0 0.0
    %2006 = vmatprep.subr.mxu0 0.0
    %2007 = vmatpush1.msra.mxu0 0.0
    %2008 = vmatprep.subr.mxu0 0.0
    %2009 = vmatpush1.msra.mxu0 0.0
    %2010 = vmatprep.subr.mxu0 0.0
    %2011 = vmatpush1.msra.mxu0 0.0
    %2012 = vmatprep.subr.mxu0 0.0
    %2013 = vmatpush1.msra.mxu0 0.0
    %2014 = vmatprep.subr.mxu0 0.0
    %2015 = vmatpush1.msra.mxu0 0.0
    %2016 = vmatprep.subr.mxu0 0.0
    %2017 = vmatpush1.msra.mxu0 0.0
    %2018 = vmatprep.subr.mxu0 0.0
    %2019 = vmatpush1.msra.mxu0 0.0
    %2020 = vmatprep.subr.mxu0 0.0
    %2021 = vmatpush1.msra.mxu0 0.0
    %2022 = vmatprep.subr.mxu0 0.0
    %2023 = vmatpush1.msra.mxu0 0.0
    %2024 = vmatprep.subr.mxu0 0.0
    %2025 = vmatpush1.msra.mxu0 0.0
    %2026 = vmatprep.subr.mxu0 0.0
    %2027 = vmatpush1.msra.mxu0 0.0
    %2028 = vmatprep.subr.mxu0 0.0
    %2029 = vmatpush1.msra.mxu0 0.0
    %2030 = vmatprep.subr.mxu0 0.0
    %2031 = vmatpush1.msra.mxu0 0.0
    %2032 = vmatprep.subr.mxu0 0.0
    %2033 = vmatpush1.msra.mxu0 0.0
    %2034 = vmatprep.subr.mxu0 0.0
    %2035 = vmatpush1.msra.mxu0 0.0
    %2036 = vmatprep.subr.mxu0 0.0
    %2037 = vmatpush1.msra.mxu0 0.0
    %2038 = vmatprep.subr.mxu0 0.0
    %2039 = vmatpush1.msra.mxu0 0.0
    %2040 = vmatprep.subr.mxu0 0.0
    %2041 = vmatpush1.msra.mxu0 0.0
    %2042 = vmatprep.subr.mxu0 0.0
    %2043 = vmatpush1.msra.mxu0 0.0
    %2044 = vmatprep.subr.mxu0 0.0
    %2045 = vmatpush1.msra.mxu0 0.0
    %2046 = vmatprep.mubr.f32.mxu0 0.0
    %2047 = vmatmul.mubr.f32.gmra.mrb[0].mxu0 %v1980
    %v2048 = vpop.f32.mrb[0].mxu0
    %v2049 = vadd.f32 0.0, %v2048
    %v2050 = vpop.f32.mrb[0].mxu0
    %2051 = vdwg.mxu0
    %2053 = vrot.lane.b32.xlu0 %v2049, 2
    %v2054 = vpop.permute.xlu0 %2053
    %v2056 = vmul.f32 %v1970, %v2054
    %v2057 = vld [vmem:[%s25] sm:$0xff]
    %v2058 = vld [vmem:[%s25 + $0x8] sm:$0xff]
    %v2059 = vld [vmem:[%s25 + $0x10] sm:$0xff]
    %v2060 = vld [vmem:[%s25 + $0x18] sm:$0xff]
    %v2061 = vld [vmem:[%s25 + $0x20] sm:$0xff]
    %v2062 = vld [vmem:[%s25 + $0x28] sm:$0xff]
    %v2063 = vld [vmem:[%s25 + $0x30] sm:$0xff]
    %v2064 = vld [vmem:[%s25 + $0x38] sm:$0xff]
    %2066 = vrot.lane.b32.xlu0 %v2056, 126
    %v2067 = vpop.permute.xlu0 %2066
    %v2068 = vsel %vm612, %v2067, 0
    %2070 = vmatprep.subr.mxu0 0.0
    %2071 = vmatpush1.msra.mxu0 %v2057
    %2072 = vmatprep.subr.mxu0 0.0
    %2073 = vmatpush1.msra.mxu0 %v2058
    %2074 = vmatprep.subr.mxu0 0.0
    %2075 = vmatpush1.msra.mxu0 %v2059
    %2076 = vmatprep.subr.mxu0 0.0
    %2077 = vmatpush1.msra.mxu0 %v2060
    %2078 = vmatprep.subr.mxu0 0.0
    %2079 = vmatpush1.msra.mxu0 %v2061
    %2080 = vmatprep.subr.mxu0 0.0
    %2081 = vmatpush1.msra.mxu0 %v2062
    %2082 = vmatprep.subr.mxu0 0.0
    %2083 = vmatpush1.msra.mxu0 %v2063
    %2084 = vmatprep.subr.mxu0 0.0
    %2085 = vmatpush1.msra.mxu0 %v2064
    %2086 = vmatprep.subr.mxu0 0.0
    %2087 = vmatpush1.msra.mxu0 0.0
    %2088 = vmatprep.subr.mxu0 0.0
    %2089 = vmatpush1.msra.mxu0 0.0
    %2090 = vmatprep.subr.mxu0 0.0
    %2091 = vmatpush1.msra.mxu0 0.0
    %2092 = vmatprep.subr.mxu0 0.0
    %2093 = vmatpush1.msra.mxu0 0.0
    %2094 = vmatprep.subr.mxu0 0.0
    %2095 = vmatpush1.msra.mxu0 0.0
    %2096 = vmatprep.subr.mxu0 0.0
    %2097 = vmatpush1.msra.mxu0 0.0
    %2098 = vmatprep.subr.mxu0 0.0
    %2099 = vmatpush1.msra.mxu0 0.0
    %2100 = vmatprep.subr.mxu0 0.0
    %2101 = vmatpush1.msra.mxu0 0.0
    %2102 = vmatprep.subr.mxu0 0.0
    %2103 = vmatpush1.msra.mxu0 0.0
    %2104 = vmatprep.subr.mxu0 0.0
    %2105 = vmatpush1.msra.mxu0 0.0
    %2106 = vmatprep.subr.mxu0 0.0
    %2107 = vmatpush1.msra.mxu0 0.0
    %2108 = vmatprep.subr.mxu0 0.0
    %2109 = vmatpush1.msra.mxu0 0.0
    %2110 = vmatprep.subr.mxu0 0.0
    %2111 = vmatpush1.msra.mxu0 0.0
    %2112 = vmatprep.subr.mxu0 0.0
    %2113 = vmatpush1.msra.mxu0 0.0
    %2114 = vmatprep.subr.mxu0 0.0
    %2115 = vmatpush1.msra.mxu0 0.0
    %2116 = vmatprep.subr.mxu0 0.0
    %2117 = vmatpush1.msra.mxu0 0.0
    %2118 = vmatprep.subr.mxu0 0.0
    %2119 = vmatpush1.msra.mxu0 0.0
    %2120 = vmatprep.subr.mxu0 0.0
    %2121 = vmatpush1.msra.mxu0 0.0
    %2122 = vmatprep.subr.mxu0 0.0
    %2123 = vmatpush1.msra.mxu0 0.0
    %2124 = vmatprep.subr.mxu0 0.0
    %2125 = vmatpush1.msra.mxu0 0.0
    %2126 = vmatprep.subr.mxu0 0.0
    %2127 = vmatpush1.msra.mxu0 0.0
    %2128 = vmatprep.subr.mxu0 0.0
    %2129 = vmatpush1.msra.mxu0 0.0
    %2130 = vmatprep.subr.mxu0 0.0
    %2131 = vmatpush1.msra.mxu0 0.0
    %2132 = vmatprep.subr.mxu0 0.0
    %2133 = vmatpush1.msra.mxu0 0.0
    %2134 = vmatprep.mubr.f32.mxu0 0.0
    %2135 = vmatmul.mubr.f32.gmra.mrb[0].mxu0 %v2068
    %v2136 = vpop.f32.mrb[0].mxu0
    %v2137 = vadd.f32 0.0, %v2136
    %v2138 = vpop.f32.mrb[0].mxu0
    %2139 = vdwg.mxu0
    %v2140 = vmul.f32 %v2137, 0.5
    %v2141 = vmax.f32 %v2140, 0.0
    %vm2142 = vcmask 254976
    %2143 = vst.msk [vmem:[#allocation2] sm:$0x3] %vm2142, %v2141
    %v2144 = vpack.c.bf16 %v1461, %v1459
    %2145 = vmatprep.subr.bf16.mxu0 0
    %2146 = vmatpush1.bf16.msra.mxu0 %v2144
    %2147 = vmatprep.subr.bf16.mxu0 0
    %2148 = vmatpush1.bf16.msra.mxu0 0
    %2149 = vmatprep.subr.bf16.mxu0 0
    %2150 = vmatpush1.bf16.msra.mxu0 0
    %2151 = vmatprep.subr.bf16.mxu0 0
    %2152 = vmatpush1.bf16.msra.mxu0 0
    %2153 = vmatprep.subr.bf16.mxu0 0
    %2154 = vmatpush1.bf16.msra.mxu0 0
    %2155 = vmatprep.subr.bf16.mxu0 0
    %2156 = vmatpush1.bf16.msra.mxu0 0
    %2157 = vmatprep.subr.bf16.mxu0 0
    %2158 = vmatpush1.bf16.msra.mxu0 0
    %2159 = vmatprep.subr.bf16.mxu0 0
    %2160 = vmatpush1.bf16.msra.mxu0 0
    %2161 = vmatprep.subr.bf16.mxu0 0
    %2162 = vmatpush1.bf16.msra.mxu0 0
    %2163 = vmatprep.subr.bf16.mxu0 0
    %2164 = vmatpush1.bf16.msra.mxu0 0
    %2165 = vmatprep.subr.bf16.mxu0 0
    %2166 = vmatpush1.bf16.msra.mxu0 0
    %2167 = vmatprep.subr.bf16.mxu0 0
    %2168 = vmatpush1.bf16.msra.mxu0 0
    %2169 = vmatprep.subr.bf16.mxu0 0
    %2170 = vmatpush1.bf16.msra.mxu0 0
    %2171 = vmatprep.subr.bf16.mxu0 0
    %2172 = vmatpush1.bf16.msra.mxu0 0
    %2173 = vmatprep.subr.bf16.mxu0 0
    %2174 = vmatpush1.bf16.msra.mxu0 0
    %2175 = vmatprep.subr.bf16.mxu0 0
    %2176 = vmatpush1.bf16.msra.mxu0 0
    %2177 = vmatprep.mubr.bf16.mxu0 0
    %2178 = vmatmul.mubr.bf16.gmra.mrb[0].mxu0 %v1047
    %v2179 = vpop.f32.mrb[0].mxu0
    %v2180 = vadd.f32 0.0, %v2179
    %v2181 = vpop.f32.mrb[0].mxu0
    %v2182 = vpop.f32.mrb[0].mxu0
    %v2183 = vadd.f32 0.0, %v2182
    %v2184 = vpop.f32.mrb[0].mxu0
    %2185 = vmatprep.mubr.bf16.mxu0 0
    %2186 = vmatmul.mubr.bf16.gmra.mrb[0].mxu0 %v1050
    %v2187 = vpop.f32.mrb[0].mxu0
    %v2188 = vadd.f32 0.0, %v2187
    %v2189 = vpop.f32.mrb[0].mxu0
    %v2190 = vpop.f32.mrb[0].mxu0
    %v2191 = vadd.f32 0.0, %v2190
    %v2192 = vpop.f32.mrb[0].mxu0
    %2193 = vdwg.mxu0
    %v2194 = vmul.f32 %v1259, %v2180
    %v2195 = vmul.f32 %v1261, %v2183
    %v2196 = vmul.f32 %v1263, %v2188
    %v2197 = vmul.f32 %v1265, %v2191
    %v2198 = vsel %vm978, %v2194, 0.0
    %2199 = vadd.xlane.f32.xlu0 %v2198
    %v2200 = vpop.xlane.xlu0 %2199
    %v2201 = vsel %vm978, %v2195, 0.0
    %2202 = vadd.xlane.f32.xlu0 %v2201
    %v2203 = vpop.xlane.xlu0 %2202
    %v2204 = vsel %vm978, %v2196, 0.0
    %2205 = vadd.xlane.f32.xlu0 %v2204
    %v2206 = vpop.xlane.xlu0 %2205
    %v2207 = vsel %vm978, %v2197, 0.0
    %2208 = vadd.xlane.f32.xlu0 %v2207
    %v2209 = vpop.xlane.xlu0 %2208
    %v2210 = vrcp.pop 2.0
    %v2211 = vmul.f32 %v2200, %v2210
    %v2212 = vmul.f32 %v2203, %v2210
    %v2213 = vmul.f32 %v2206, %v2210
    %v2214 = vmul.f32 %v2209, %v2210
    %vm2215 = vcmask 7168
    %2216 = vst.msk [vmem:[%s27] sm:$0xff] %vm2215, %v2211
    %2217 = vst.msk [vmem:[%s27 + $0x8] sm:$0xff] %vm2215, %v2212
    %2218 = vst.msk [vmem:[%s27 + $0x10] sm:$0xff] %vm2215, %v2213
    %2219 = vst.msk [vmem:[%s27 + $0x18] sm:$0xff] %vm2215, %v2214
    // Predicated region
    $region106: #{tpu_custom_call.1} parent=1 // pred_check
      _
    $region107: #{tpu_custom_call.1} parent=1 // pred_check_branch
      %2221 = sbr.rel (0) target = $region109
    $region108: #{tpu_custom_call.1} parent=1 // pred_region
      %s2223 = ssub.s32 32, 32
      %2224 = vsyncadd [#allocation3], %s2223
      %s2226 = sshll.u32 [#allocation2], 4
      %s2227 = int_to_ptr.vmem [resolvable:$true] %s2226
      %2229 = dma.vmem_to_hbm [thread:$0]  %s2227, 32, %s26, [#allocation3]
    $region109: #{tpu_custom_call.1} parent=1 // pred_fallthru
      _
    // Predicated region
    $region110: #{tpu_custom_call.1} parent=1 // pred_check
      _
    $region111: #{tpu_custom_call.1} parent=1 // pred_check_branch
      %2231 = sbr.rel (0) target = $region113
    $region112: #{tpu_custom_call.1} parent=1 // pred_region
      _
    $region113: #{tpu_custom_call.1} parent=1 // pred_fallthru
      _
    // Predicated region
    $region114: #{tpu_custom_call.1} parent=1 // pred_check
      _
    $region115: #{tpu_custom_call.1} parent=1 // pred_check_branch
      %2233 = sbr.rel (0) target = $region117
    $region116: #{tpu_custom_call.1} parent=1 // pred_region
      %2234 = dma.done [#allocation3], 32
    $region117: #{tpu_custom_call.1} parent=1 // pred_fallthru
      _
    // Predicated region
    $region118: #{tpu_custom_call.1} parent=1 // pred_check
      _
    $region119: #{tpu_custom_call.1} parent=1 // pred_check_branch
      %2236 = sbr.rel (0) target = $region121
    $region120: #{tpu_custom_call.1} parent=1 // pred_region
      _
    $region121: #{tpu_custom_call.1} parent=1 // pred_fallthru
      _
    %2237 = vsyncpa [#allocation3], 1

</llo_original>
